<compile_context>
chip_gen: v7x
topology: tpu7x:2x2x1
jax: 0.10.0
libtpu: 0.0.40
codegen_flags: <defaults>
</compile_context>

<pallas_src>
import jax
import jax.numpy as jnp
from jax import lax
from jax.experimental import pallas as pl
from jax.experimental.pallas import tpu as pltpu


def _round_up(x, m):
    return ((x + m - 1) // m) * m


def _vmem_params():
    """(tiling budget bytes, vmem_limit_bytes or None) for the local TPU."""
    kind = ""
    try:
        kind = jax.devices()[0].device_kind.lower()
    except Exception:
        pass
    if "v7" in kind or "7x" in kind:
        # 64 MiB physical VMEM per TensorCore -> stay well under it.
        return 36 * 1024 * 1024, 48 * 1024 * 1024
    if "v5 lite" in kind or "v5e" in kind or "v5lite" in kind or "v6" in kind:
        # 128 MiB physical VMEM -> raise the 32 MiB scoped default.
        return 80 * 1024 * 1024, 110 * 1024 * 1024
    # Unknown device: stay inside the default scoped VMEM limit.
    return 12 * 1024 * 1024, None


def _compiler_params(vmem_limit):
    kwargs = dict(dimension_semantics=("parallel",))
    if vmem_limit is not None:
        kwargs["vmem_limit_bytes"] = int(vmem_limit)
    return pltpu.CompilerParams(**kwargs)


def _choose_row_tile(R, Wp, D, N, ph, lane, in_bytes, out_bytes, budget):
    """Rows-of-patch-grid per grid step, sized to the VMEM budget."""
    Dp = _round_up(D, 128)
    Np = _round_up(N, 128)
    lane_p = _round_up(lane, 128)
    per_r = (2 * Wp * Dp * in_bytes          # x block, double-buffered
             + 2 * ph * lane_p * out_bytes   # out block, double-buffered
             + Wp * Np * 4)                  # f32 matmul scratch
    fixed = 2 * (_round_up(D, 8) * Np * 4 + Np * 4) + (2 << 20)  # w + b + slack
    avail = max(budget - fixed, per_r)
    tr = max(1, int(avail // per_r))
    if R >= 2:
        tr = min(tr, pl.cdiv(R, 2))          # keep >=2 grid steps (v7x megacore)
    tr = min(tr, R)
    if tr < R:
        tr = max(8, (tr // 8) * 8)           # keep tr*ph / tr*Wp sublane-aligned
        tr = min(tr, R)
    return int(tr)


def _fused_decode(x2d, w, b2, *, Wp, ph, pw, Q, budget, vmem_limit,
                  single_buffer_resident):
    """Token matmul + bias + fused un-patchify, lane-dense output.

    x2d: (M, D) with M = B*T*Hp*Wp (token-major).
    Returns (B*T*Hp*ph, Wp*pw*Q) -- already the final contiguous memory order.
    """
    M, D = x2d.shape
    N = w.shape[1]
    assert N == ph * pw * Q
    R = M // Wp                   # B*T*Hp image-rows of patches
    pwq = pw * Q
    lane = Wp * pwq               # output lane width (full W*Q row)
    out_dtype = x2d.dtype

    tr = _choose_row_tile(R, Wp, D, N, ph, lane,
                          jnp.dtype(x2d.dtype).itemsize,
                          jnp.dtype(out_dtype).itemsize, budget)
    grid = (pl.cdiv(R, tr),)

    def kernel(x_ref, w_ref, b_ref, o_ref, y_ref):
        # One big MXU matmul for the whole row tile, f32 accumulation.
        y_ref[...] = (
            jnp.dot(x_ref[...], w_ref[...], preferred_element_type=jnp.float32)
            + b_ref[...])
        # Fused un-patchify: token w of patch-row r sits at scratch row
        # r*Wp + w; gather per-w strided slabs once, then emit ph lane-dense
        # output rows per patch-row (stored with sublane stride ph).
        rows = [y_ref[pl.ds(k, tr, stride=Wp), :] for k in range(Wp)]
        for i in range(ph):
            row_i = jnp.concatenate(
                [r[:, i * pwq:(i + 1) * pwq] for r in rows], axis=-1)
            o_ref[pl.ds(i, tr, stride=ph), :] = row_i.astype(o_ref.dtype)

    resident = {}
    if single_buffer_resident:
        # Weight/bias have a constant index_map -> no need to double-buffer.
        resident = dict(pipeline_mode=pl.Buffered(1))

    return pl.pallas_call(
        kernel,
        out_shape=jax.ShapeDtypeStruct((R * ph, lane), out_dtype),
        grid_spec=pltpu.PrefetchScalarGridSpec(
            num_scalar_prefetch=0,
            grid=grid,
            in_specs=[
                pl.BlockSpec((tr * Wp, D), lambda i: (i, 0)),         # tokens
                pl.BlockSpec((D, N), lambda i: (0, 0), **resident),   # weight
                pl.BlockSpec((1, N), lambda i: (0, 0), **resident),   # bias
            ],
            out_specs=pl.BlockSpec((tr * ph, lane), lambda i: (i, 0)),
            scratch_shapes=[pltpu.VMEM((tr * Wp, N), jnp.float32)],
        ),
        compiler_params=_compiler_params(vmem_limit),
    )(x2d, w, b2)


def _simple_decode(x2d, w, b2, *, budget, vmem_limit):
    """Safe fallback: big-tile token matmul, un-patchify left to XLA."""
    M, D = x2d.shape
    N = w.shape[1]
    out_dtype = x2d.dtype
    Dp = _round_up(D, 128)
    Np = _round_up(N, 128)
    per_row = (2 * Dp * jnp.dtype(x2d.dtype).itemsize
               + 2 * Np * jnp.dtype(out_dtype).itemsize)
    fixed = 2 * (_round_up(D, 8) * Np * 4 + Np * 4) + (2 << 20)
    tm = max(1, int(max(budget - fixed, per_row) // per_row))
    if M >= 2:
        tm = min(tm, pl.cdiv(M, 2))
    tm = min(tm, M)
    if tm < M:
        tm = max(8, (tm // 8) * 8)
        tm = min(tm, M)

    def kernel(x_ref, w_ref, b_ref, o_ref):
        acc = jnp.dot(x_ref[...], w_ref[...], preferred_element_type=jnp.float32)
        o_ref[...] = (acc + b_ref[...]).astype(o_ref.dtype)

    return pl.pallas_call(
        kernel,
        out_shape=jax.ShapeDtypeStruct((M, N), out_dtype),
        grid_spec=pltpu.PrefetchScalarGridSpec(
            num_scalar_prefetch=0,
            grid=(pl.cdiv(M, tm),),
            in_specs=[
                pl.BlockSpec((tm, D), lambda i: (i, 0)),
                pl.BlockSpec((D, N), lambda i: (0, 0)),
                pl.BlockSpec((1, N), lambda i: (0, 0)),
            ],
            out_specs=pl.BlockSpec((tm, N), lambda i: (i, 0)),
        ),
        compiler_params=_compiler_params(vmem_limit),
    )(x2d, w, b2)


def decoder_wrapper_forward(x, w, b, Q, ph, pw, *, input_dtype=None):
    """Equivalent of DecoderWrapper.forward with a linear patch-decoder.

    x: (B, T, Hp, Wp, D) -> (B, T, Hp*ph, Wp*pw, Q)

    input_dtype: optionally pass jnp.bfloat16 on v6e/v7x to halve the HBM-bound
    token read (accumulation stays f32).  Kept at f32 here so the demo matches
    the f32 reference tightly.
    """
    B, T, Hp, Wp, D = x.shape
    N = w.shape[1]
    assert N == ph * pw * Q
    if input_dtype is not None:
        x = x.astype(input_dtype)
        w = w.astype(input_dtype)
    M = B * T * Hp * Wp
    x2d = x.reshape(M, D)                       # free view, token-major
    b2 = b.astype(jnp.float32).reshape(1, N)
    budget, vmem_limit = _vmem_params()

    last_err = None
    # Try: fused + single-buffered residents -> fused -> simple unfused.
    for fused, single_buf in ((True, True), (True, False), (False, False)):
        try:
            if fused:
                y = _fused_decode(x2d, w, b2, Wp=Wp, ph=ph, pw=pw, Q=Q,
                                  budget=budget, vmem_limit=vmem_limit,
                                  single_buffer_resident=single_buf)
                y = jax.block_until_ready(y)
                # (B*T*Hp*ph, Wp*pw*Q) is already the final memory order.
                return y.reshape(B, T, Hp * ph, Wp * pw, Q)
            y = _simple_decode(x2d, w, b2, budget=budget, vmem_limit=vmem_limit)
            y = jax.block_until_ready(y)
            y = y.reshape(B, T, Hp, Wp, ph, pw, Q)
            y = jnp.transpose(y, (0, 1, 2, 4, 3, 5, 6))
            return y.reshape(B, T, Hp * ph, Wp * pw, Q)
        except Exception as err:  # lowering/runtime fallback for older builds
            last_err = err
    raise last_err


def reference_forward(x, w, b, Q, ph, pw):
    B, T, Hp, Wp, D = x.shape
    y = jnp.einsum("bthwd,dn->bthwn", x, w,
                   precision=lax.Precision.HIGHEST) + b
    y = y.reshape(B, T, Hp, Wp, ph, pw, Q)
    y = jnp.transpose(y, (0, 1, 2, 4, 3, 5, 6))
    return y.reshape(B, T, Hp * ph, Wp * pw, Q)


if __name__ == "__main__":
    # Small shapes consistent with the module's forward; Wp*pw*Q = 128 so the
    # fused kernel's output rows are exactly one full lane width.
    B, T, Hp, Wp, D = 2, 2, 4, 8, 32
    ph, pw, Q = 2, 2, 8
    N = ph * pw * Q

    key = jax.random.PRNGKey(0)
    kx, kw, kb = jax.random.split(key, 3)

    x = jax.random.normal(kx, (B, T, Hp, Wp, D), dtype=jnp.float32)
    scale = 1.0 / (D ** 0.5)
    w = jax.random.uniform(kw, (D, N), dtype=jnp.float32,
                           minval=-scale, maxval=scale)
    b = jax.random.uniform(kb, (N,), dtype=jnp.float32,
                           minval=-scale, maxval=scale)

    out = decoder_wrapper_forward(x, w, b, Q, ph, pw)
    out = jax.block_until_ready(out)

    ref = reference_forward(x, w, b, Q, ph, pw)
    assert out.shape == (B, T, Hp * ph, Wp * pw, Q), out.shape
    assert jnp.allclose(out, ref, atol=1e-4, rtol=1e-4), \
        float(jnp.max(jnp.abs(out - ref)))

    print("KERNEL_OK")
</pallas_src>

<mosaic_0001>
module attributes {stable_mosaic.version = 11 : i64} {
  func.func @kernel(%arg0: i32, %arg1: memref<64x32xf32, #tpu.memory_space<vmem>>, %arg2: memref<32x32xf32, #tpu.memory_space<vmem>>, %arg3: memref<1x32xf32, #tpu.memory_space<vmem>>, %arg4: memref<16x128xf32, #tpu.memory_space<vmem>>, %arg5: memref<64x32xf32, #tpu.memory_space<vmem>>) attributes {dimension_semantics = [#tpu.dimension_semantics<parallel>], iteration_bounds = array<i64: 2>, scalar_prefetch = 0 : i64, scratch_operands = 1 : i64, tpu.core_type = #tpu.core_type<tc>, window_params = [{transform_indices = @transform_0, window_bounds = array<i64: 64, 32>}, {pipeline_mode = #tpu.pipeline_mode<synchronous>, transform_indices = @transform_1, window_bounds = array<i64: 32, 32>}, {pipeline_mode = #tpu.pipeline_mode<synchronous>, transform_indices = @transform_2, window_bounds = array<i64: 1, 32>}, {transform_indices = @transform_3, window_bounds = array<i64: 16, 128>}]} {
    %c0 = arith.constant 0 : index
    %c0_0 = arith.constant 0 : index
    %0 = vector.load %arg1[%c0, %c0_0] : memref<64x32xf32, #tpu.memory_space<vmem>>, vector<64x32xf32>
    %c0_1 = arith.constant 0 : index
    %c0_2 = arith.constant 0 : index
    %1 = vector.load %arg2[%c0_1, %c0_2] : memref<32x32xf32, #tpu.memory_space<vmem>>, vector<32x32xf32>
    %cst = arith.constant dense<0.000000e+00> : vector<64x32xf32>
    %2 = tpu.matmul %0, %1, %cst {dimension_numbers = #tpu.dot_dimension_numbers<[1], [0], [0], [1], [0, 0, 1, 1], [], []>} : vector<64x32xf32>, vector<32x32xf32>, vector<64x32xf32> -> vector<64x32xf32>
    %c0_3 = arith.constant 0 : index
    %c0_4 = arith.constant 0 : index
    %3 = vector.load %arg3[%c0_3, %c0_4] : memref<1x32xf32, #tpu.memory_space<vmem>>, vector<1x32xf32>
    %4 = vector.broadcast %3 : vector<1x32xf32> to vector<64x32xf32>
    %5 = arith.addf %2, %4 : vector<64x32xf32>
    %c0_5 = arith.constant 0 : index
    %c0_6 = arith.constant 0 : index
    %6 = vector.load %arg5[%c0_5, %c0_6] : memref<64x32xf32, #tpu.memory_space<vmem>>, vector<64x32xf32>
    tpu.vector_store %arg5[%c0_5, %c0_6], %5 {strides = array<i32>} : memref<64x32xf32, #tpu.memory_space<vmem>>, vector<64x32xf32>,
    %c0_7 = arith.constant 0 : index
    %c0_8 = arith.constant 0 : index
    %7 = tpu.strided_load %arg5[%c0_7, %c0_8] {strides = array<i32: 8, 1>} : memref<64x32xf32, #tpu.memory_space<vmem>>, vector<8x32xf32>
    %c1 = arith.constant 1 : index
    %c0_9 = arith.constant 0 : index
    %8 = tpu.strided_load %arg5[%c1, %c0_9] {strides = array<i32: 8, 1>} : memref<64x32xf32, #tpu.memory_space<vmem>>, vector<8x32xf32>
    %c2 = arith.constant 2 : index
    %c0_10 = arith.constant 0 : index
    %9 = tpu.strided_load %arg5[%c2, %c0_10] {strides = array<i32: 8, 1>} : memref<64x32xf32, #tpu.memory_space<vmem>>, vector<8x32xf32>
    %c3 = arith.constant 3 : index
    %c0_11 = arith.constant 0 : index
    %10 = tpu.strided_load %arg5[%c3, %c0_11] {strides = array<i32: 8, 1>} : memref<64x32xf32, #tpu.memory_space<vmem>>, vector<8x32xf32>
    %c4 = arith.constant 4 : index
    %c0_12 = arith.constant 0 : index
    %11 = tpu.strided_load %arg5[%c4, %c0_12] {strides = array<i32: 8, 1>} : memref<64x32xf32, #tpu.memory_space<vmem>>, vector<8x32xf32>
    %c5 = arith.constant 5 : index
    %c0_13 = arith.constant 0 : index
    %12 = tpu.strided_load %arg5[%c5, %c0_13] {strides = array<i32: 8, 1>} : memref<64x32xf32, #tpu.memory_space<vmem>>, vector<8x32xf32>
    %c6 = arith.constant 6 : index
    %c0_14 = arith.constant 0 : index
    %13 = tpu.strided_load %arg5[%c6, %c0_14] {strides = array<i32: 8, 1>} : memref<64x32xf32, #tpu.memory_space<vmem>>, vector<8x32xf32>
    %c7 = arith.constant 7 : index
    %c0_15 = arith.constant 0 : index
    %14 = tpu.strided_load %arg5[%c7, %c0_15] {strides = array<i32: 8, 1>} : memref<64x32xf32, #tpu.memory_space<vmem>>, vector<8x32xf32>
    %15 = vector.extract_strided_slice %7 {offsets = [0, 0], sizes = [8, 16], strides = [1, 1]} : vector<8x32xf32> to vector<8x16xf32>
    %16 = vector.extract_strided_slice %8 {offsets = [0, 0], sizes = [8, 16], strides = [1, 1]} : vector<8x32xf32> to vector<8x16xf32>
    %17 = vector.extract_strided_slice %9 {offsets = [0, 0], sizes = [8, 16], strides = [1, 1]} : vector<8x32xf32> to vector<8x16xf32>
    %18 = vector.extract_strided_slice %10 {offsets = [0, 0], sizes = [8, 16], strides = [1, 1]} : vector<8x32xf32> to vector<8x16xf32>
    %19 = vector.extract_strided_slice %11 {offsets = [0, 0], sizes = [8, 16], strides = [1, 1]} : vector<8x32xf32> to vector<8x16xf32>
    %20 = vector.extract_strided_slice %12 {offsets = [0, 0], sizes = [8, 16], strides = [1, 1]} : vector<8x32xf32> to vector<8x16xf32>
    %21 = vector.extract_strided_slice %13 {offsets = [0, 0], sizes = [8, 16], strides = [1, 1]} : vector<8x32xf32> to vector<8x16xf32>
    %22 = vector.extract_strided_slice %14 {offsets = [0, 0], sizes = [8, 16], strides = [1, 1]} : vector<8x32xf32> to vector<8x16xf32>
    %23 = tpu.concatenate %15, %16, %17, %18, %19, %20, %21, %22 in 1 : vector<8x16xf32>, vector<8x16xf32>, vector<8x16xf32>, vector<8x16xf32>, vector<8x16xf32>, vector<8x16xf32>, vector<8x16xf32>, vector<8x16xf32> -> vector<8x128xf32>
    %c0_16 = arith.constant 0 : index
    %c0_17 = arith.constant 0 : index
    %24 = tpu.strided_load %arg4[%c0_16, %c0_17] {strides = array<i32: 2, 1>} : memref<16x128xf32, #tpu.memory_space<vmem>>, vector<8x128xf32>
    tpu.strided_store %arg4[%c0_16, %c0_17], %23 {strides = array<i32: 2, 1>} : memref<16x128xf32, #tpu.memory_space<vmem>>, vector<8x128xf32>
    %25 = vector.extract_strided_slice %7 {offsets = [0, 16], sizes = [8, 16], strides = [1, 1]} : vector<8x32xf32> to vector<8x16xf32>
    %26 = vector.extract_strided_slice %8 {offsets = [0, 16], sizes = [8, 16], strides = [1, 1]} : vector<8x32xf32> to vector<8x16xf32>
    %27 = vector.extract_strided_slice %9 {offsets = [0, 16], sizes = [8, 16], strides = [1, 1]} : vector<8x32xf32> to vector<8x16xf32>
    %28 = vector.extract_strided_slice %10 {offsets = [0, 16], sizes = [8, 16], strides = [1, 1]} : vector<8x32xf32> to vector<8x16xf32>
    %29 = vector.extract_strided_slice %11 {offsets = [0, 16], sizes = [8, 16], strides = [1, 1]} : vector<8x32xf32> to vector<8x16xf32>
    %30 = vector.extract_strided_slice %12 {offsets = [0, 16], sizes = [8, 16], strides = [1, 1]} : vector<8x32xf32> to vector<8x16xf32>
    %31 = vector.extract_strided_slice %13 {offsets = [0, 16], sizes = [8, 16], strides = [1, 1]} : vector<8x32xf32> to vector<8x16xf32>
    %32 = vector.extract_strided_slice %14 {offsets = [0, 16], sizes = [8, 16], strides = [1, 1]} : vector<8x32xf32> to vector<8x16xf32>
    %33 = tpu.concatenate %25, %26, %27, %28, %29, %30, %31, %32 in 1 : vector<8x16xf32>, vector<8x16xf32>, vector<8x16xf32>, vector<8x16xf32>, vector<8x16xf32>, vector<8x16xf32>, vector<8x16xf32>, vector<8x16xf32> -> vector<8x128xf32>
    %c1_18 = arith.constant 1 : index
    %c0_19 = arith.constant 0 : index
    %34 = tpu.strided_load %arg4[%c1_18, %c0_19] {strides = array<i32: 2, 1>} : memref<16x128xf32, #tpu.memory_space<vmem>>, vector<8x128xf32>
    tpu.strided_store %arg4[%c1_18, %c0_19], %33 {strides = array<i32: 2, 1>} : memref<16x128xf32, #tpu.memory_space<vmem>>, vector<8x128xf32>
    return
  }
  func.func @transform_0(%arg0: i32) -> (i32, i32) {
    %c0_i32 = arith.constant 0 : i32
    %c0_i32_0 = arith.constant 0 : i32
    return %arg0, %c0_i32 : i32, i32
  }
  func.func @transform_1(%arg0: i32) -> (i32, i32) {
    %c0_i32 = arith.constant 0 : i32
    %c0_i32_0 = arith.constant 0 : i32
    %c0_i32_1 = arith.constant 0 : i32
    return %c0_i32, %c0_i32_0 : i32, i32
  }
  func.func @transform_2(%arg0: i32) -> (i32, i32) {
    %c0_i32 = arith.constant 0 : i32
    %c0_i32_0 = arith.constant 0 : i32
    %c0_i32_1 = arith.constant 0 : i32
    return %c0_i32, %c0_i32_0 : i32, i32
  }
  func.func @transform_3(%arg0: i32) -> (i32, i32) {
    %c0_i32 = arith.constant 0 : i32
    %c0_i32_0 = arith.constant 0 : i32
    return %arg0, %c0_i32 : i32, i32
  }
}

module attributes {stable_mosaic.version = 11 : i64} {
  func.func @kernel(%arg0: i32, %arg1: memref<64x32xf32, #tpu.memory_space<vmem>>, %arg2: memref<32x32xf32, #tpu.memory_space<vmem>>, %arg3: memref<1x32xf32, #tpu.memory_space<vmem>>, %arg4: memref<16x128xf32, #tpu.memory_space<vmem>>, %arg5: memref<64x32xf32, #tpu.memory_space<vmem>>) attributes {dimension_semantics = [#tpu.dimension_semantics<parallel>], iteration_bounds = array<i64: 2>, scalar_prefetch = 0 : i64, scratch_operands = 1 : i64, tpu.core_type = #tpu.core_type<tc>, window_params = [{transform_indices = @transform_0, window_bounds = array<i64: 64, 32>}, {pipeline_mode = #tpu.pipeline_mode<synchronous>, transform_indices = @transform_1, window_bounds = array<i64: 32, 32>}, {pipeline_mode = #tpu.pipeline_mode<synchronous>, transform_indices = @transform_2, window_bounds = array<i64: 1, 32>}, {transform_indices = @transform_3, window_bounds = array<i64: 16, 128>}]} {
    %c0 = arith.constant 0 : index
    %c0_0 = arith.constant 0 : index
    %0 = vector.load %arg1[%c0, %c0_0] : memref<64x32xf32, #tpu.memory_space<vmem>>, vector<64x32xf32>
    %c0_1 = arith.constant 0 : index
    %c0_2 = arith.constant 0 : index
    %1 = vector.load %arg2[%c0_1, %c0_2] : memref<32x32xf32, #tpu.memory_space<vmem>>, vector<32x32xf32>
    %cst = arith.constant dense<0.000000e+00> : vector<64x32xf32>
    %2 = tpu.matmul %0, %1, %cst {dimension_numbers = #tpu.dot_dimension_numbers<[1], [0], [0], [1], [0, 0, 1, 1], [], []>} : vector<64x32xf32>, vector<32x32xf32>, vector<64x32xf32> -> vector<64x32xf32>
    %c0_3 = arith.constant 0 : index
    %c0_4 = arith.constant 0 : index
    %3 = vector.load %arg3[%c0_3, %c0_4] : memref<1x32xf32, #tpu.memory_space<vmem>>, vector<1x32xf32>
    %4 = vector.broadcast %3 : vector<1x32xf32> to vector<64x32xf32>
    %5 = arith.addf %2, %4 : vector<64x32xf32>
    %c0_5 = arith.constant 0 : index
    %c0_6 = arith.constant 0 : index
    %6 = vector.load %arg5[%c0_5, %c0_6] : memref<64x32xf32, #tpu.memory_space<vmem>>, vector<64x32xf32>
    tpu.vector_store %arg5[%c0_5, %c0_6], %5 {strides = array<i32>} : memref<64x32xf32, #tpu.memory_space<vmem>>, vector<64x32xf32>,
    %c0_7 = arith.constant 0 : index
    %c0_8 = arith.constant 0 : index
    %7 = tpu.strided_load %arg5[%c0_7, %c0_8] {strides = array<i32: 8, 1>} : memref<64x32xf32, #tpu.memory_space<vmem>>, vector<8x32xf32>
    %c1 = arith.constant 1 : index
    %c0_9 = arith.constant 0 : index
    %8 = tpu.strided_load %arg5[%c1, %c0_9] {strides = array<i32: 8, 1>} : memref<64x32xf32, #tpu.memory_space<vmem>>, vector<8x32xf32>
    %c2 = arith.constant 2 : index
    %c0_10 = arith.constant 0 : index
    %9 = tpu.strided_load %arg5[%c2, %c0_10] {strides = array<i32: 8, 1>} : memref<64x32xf32, #tpu.memory_space<vmem>>, vector<8x32xf32>
    %c3 = arith.constant 3 : index
    %c0_11 = arith.constant 0 : index
    %10 = tpu.strided_load %arg5[%c3, %c0_11] {strides = array<i32: 8, 1>} : memref<64x32xf32, #tpu.memory_space<vmem>>, vector<8x32xf32>
    %c4 = arith.constant 4 : index
    %c0_12 = arith.constant 0 : index
    %11 = tpu.strided_load %arg5[%c4, %c0_12] {strides = array<i32: 8, 1>} : memref<64x32xf32, #tpu.memory_space<vmem>>, vector<8x32xf32>
    %c5 = arith.constant 5 : index
    %c0_13 = arith.constant 0 : index
    %12 = tpu.strided_load %arg5[%c5, %c0_13] {strides = array<i32: 8, 1>} : memref<64x32xf32, #tpu.memory_space<vmem>>, vector<8x32xf32>
    %c6 = arith.constant 6 : index
    %c0_14 = arith.constant 0 : index
    %13 = tpu.strided_load %arg5[%c6, %c0_14] {strides = array<i32: 8, 1>} : memref<64x32xf32, #tpu.memory_space<vmem>>, vector<8x32xf32>
    %c7 = arith.constant 7 : index
    %c0_15 = arith.constant 0 : index
    %14 = tpu.strided_load %arg5[%c7, %c0_15] {strides = array<i32: 8, 1>} : memref<64x32xf32, #tpu.memory_space<vmem>>, vector<8x32xf32>
    %15 = vector.extract_strided_slice %7 {offsets = [0, 0], sizes = [8, 16], strides = [1, 1]} : vector<8x32xf32> to vector<8x16xf32>
    %16 = vector.extract_strided_slice %8 {offsets = [0, 0], sizes = [8, 16], strides = [1, 1]} : vector<8x32xf32> to vector<8x16xf32>
    %17 = vector.extract_strided_slice %9 {offsets = [0, 0], sizes = [8, 16], strides = [1, 1]} : vector<8x32xf32> to vector<8x16xf32>
    %18 = vector.extract_strided_slice %10 {offsets = [0, 0], sizes = [8, 16], strides = [1, 1]} : vector<8x32xf32> to vector<8x16xf32>
    %19 = vector.extract_strided_slice %11 {offsets = [0, 0], sizes = [8, 16], strides = [1, 1]} : vector<8x32xf32> to vector<8x16xf32>
    %20 = vector.extract_strided_slice %12 {offsets = [0, 0], sizes = [8, 16], strides = [1, 1]} : vector<8x32xf32> to vector<8x16xf32>
    %21 = vector.extract_strided_slice %13 {offsets = [0, 0], sizes = [8, 16], strides = [1, 1]} : vector<8x32xf32> to vector<8x16xf32>
    %22 = vector.extract_strided_slice %14 {offsets = [0, 0], sizes = [8, 16], strides = [1, 1]} : vector<8x32xf32> to vector<8x16xf32>
    %23 = tpu.concatenate %15, %16, %17, %18, %19, %20, %21, %22 in 1 : vector<8x16xf32>, vector<8x16xf32>, vector<8x16xf32>, vector<8x16xf32>, vector<8x16xf32>, vector<8x16xf32>, vector<8x16xf32>, vector<8x16xf32> -> vector<8x128xf32>
    %c0_16 = arith.constant 0 : index
    %c0_17 = arith.constant 0 : index
    %24 = tpu.strided_load %arg4[%c0_16, %c0_17] {strides = array<i32: 2, 1>} : memref<16x128xf32, #tpu.memory_space<vmem>>, vector<8x128xf32>
    tpu.strided_store %arg4[%c0_16, %c0_17], %23 {strides = array<i32: 2, 1>} : memref<16x128xf32, #tpu.memory_space<vmem>>, vector<8x128xf32>
    %25 = vector.extract_strided_slice %7 {offsets = [0, 16], sizes = [8, 16], strides = [1, 1]} : vector<8x32xf32> to vector<8x16xf32>
    %26 = vector.extract_strided_slice %8 {offsets = [0, 16], sizes = [8, 16], strides = [1, 1]} : vector<8x32xf32> to vector<8x16xf32>
    %27 = vector.extract_strided_slice %9 {offsets = [0, 16], sizes = [8, 16], strides = [1, 1]} : vector<8x32xf32> to vector<8x16xf32>
    %28 = vector.extract_strided_slice %10 {offsets = [0, 16], sizes = [8, 16], strides = [1, 1]} : vector<8x32xf32> to vector<8x16xf32>
    %29 = vector.extract_strided_slice %11 {offsets = [0, 16], sizes = [8, 16], strides = [1, 1]} : vector<8x32xf32> to vector<8x16xf32>
    %30 = vector.extract_strided_slice %12 {offsets = [0, 16], sizes = [8, 16], strides = [1, 1]} : vector<8x32xf32> to vector<8x16xf32>
    %31 = vector.extract_strided_slice %13 {offsets = [0, 16], sizes = [8, 16], strides = [1, 1]} : vector<8x32xf32> to vector<8x16xf32>
    %32 = vector.extract_strided_slice %14 {offsets = [0, 16], sizes = [8, 16], strides = [1, 1]} : vector<8x32xf32> to vector<8x16xf32>
    %33 = tpu.concatenate %25, %26, %27, %28, %29, %30, %31, %32 in 1 : vector<8x16xf32>, vector<8x16xf32>, vector<8x16xf32>, vector<8x16xf32>, vector<8x16xf32>, vector<8x16xf32>, vector<8x16xf32>, vector<8x16xf32> -> vector<8x128xf32>
    %c1_18 = arith.constant 1 : index
    %c0_19 = arith.constant 0 : index
    %34 = tpu.strided_load %arg4[%c1_18, %c0_19] {strides = array<i32: 2, 1>} : memref<16x128xf32, #tpu.memory_space<vmem>>, vector<8x128xf32>
    tpu.strided_store %arg4[%c1_18, %c0_19], %33 {strides = array<i32: 2, 1>} : memref<16x128xf32, #tpu.memory_space<vmem>>, vector<8x128xf32>
    return
  }
  func.func @transform_0(%arg0: i32) -> (i32, i32) {
    %c0_i32 = arith.constant 0 : i32
    %c0_i32_0 = arith.constant 0 : i32
    return %arg0, %c0_i32 : i32, i32
  }
  func.func @transform_1(%arg0: i32) -> (i32, i32) {
    %c0_i32 = arith.constant 0 : i32
    %c0_i32_0 = arith.constant 0 : i32
    %c0_i32_1 = arith.constant 0 : i32
    return %c0_i32, %c0_i32_0 : i32, i32
  }
  func.func @transform_2(%arg0: i32) -> (i32, i32) {
    %c0_i32 = arith.constant 0 : i32
    %c0_i32_0 = arith.constant 0 : i32
    %c0_i32_1 = arith.constant 0 : i32
    return %c0_i32, %c0_i32_0 : i32, i32
  }
  func.func @transform_3(%arg0: i32) -> (i32, i32) {
    %c0_i32 = arith.constant 0 : i32
    %c0_i32_0 = arith.constant 0 : i32
    return %arg0, %c0_i32 : i32, i32
  }
}

module attributes {stable_mosaic.version = 11 : i64} {
  func.func @kernel(%arg0: i32, %arg1: memref<64x32xf32, #tpu.memory_space<vmem>>, %arg2: memref<32x32xf32, #tpu.memory_space<vmem>>, %arg3: memref<1x32xf32, #tpu.memory_space<vmem>>, %arg4: memref<64x32xf32, #tpu.memory_space<vmem>>) attributes {dimension_semantics = [#tpu.dimension_semantics<parallel>], iteration_bounds = array<i64: 2>, scalar_prefetch = 0 : i64, scratch_operands = 0 : i64, tpu.core_type = #tpu.core_type<tc>, window_params = [{transform_indices = @transform_0, window_bounds = array<i64: 64, 32>}, {pipeline_mode = #tpu.pipeline_mode<synchronous>, transform_indices = @transform_1, window_bounds = array<i64: 32, 32>}, {pipeline_mode = #tpu.pipeline_mode<synchronous>, transform_indices = @transform_2, window_bounds = array<i64: 1, 32>}, {transform_indices = @transform_3, window_bounds = array<i64: 64, 32>}]} {
    %c0 = arith.constant 0 : index
    %c0_0 = arith.constant 0 : index
    %0 = vector.load %arg1[%c0, %c0_0] : memref<64x32xf32, #tpu.memory_space<vmem>>, vector<64x32xf32>
    %c0_1 = arith.constant 0 : index
    %c0_2 = arith.constant 0 : index
    %1 = vector.load %arg2[%c0_1, %c0_2] : memref<32x32xf32, #tpu.memory_space<vmem>>, vector<32x32xf32>
    %cst = arith.constant dense<0.000000e+00> : vector<64x32xf32>
    %2 = tpu.matmul %0, %1, %cst {dimension_numbers = #tpu.dot_dimension_numbers<[1], [0], [0], [1], [0, 0, 1, 1], [], []>} : vector<64x32xf32>, vector<32x32xf32>, vector<64x32xf32> -> vector<64x32xf32>
    %c0_3 = arith.constant 0 : index
    %c0_4 = arith.constant 0 : index
    %3 = vector.load %arg3[%c0_3, %c0_4] : memref<1x32xf32, #tpu.memory_space<vmem>>, vector<1x32xf32>
    %4 = vector.broadcast %3 : vector<1x32xf32> to vector<64x32xf32>
    %5 = arith.addf %2, %4 : vector<64x32xf32>
    %c0_5 = arith.constant 0 : index
    %c0_6 = arith.constant 0 : index
    %6 = vector.load %arg4[%c0_5, %c0_6] : memref<64x32xf32, #tpu.memory_space<vmem>>, vector<64x32xf32>
    tpu.vector_store %arg4[%c0_5, %c0_6], %5 {strides = array<i32>} : memref<64x32xf32, #tpu.memory_space<vmem>>, vector<64x32xf32>,
    return
  }
  func.func @transform_0(%arg0: i32) -> (i32, i32) {
    %c0_i32 = arith.constant 0 : i32
    %c0_i32_0 = arith.constant 0 : i32
    return %arg0, %c0_i32 : i32, i32
  }
  func.func @transform_1(%arg0: i32) -> (i32, i32) {
    %c0_i32 = arith.constant 0 : i32
    %c0_i32_0 = arith.constant 0 : i32
    %c0_i32_1 = arith.constant 0 : i32
    return %c0_i32, %c0_i32_0 : i32, i32
  }
  func.func @transform_2(%arg0: i32) -> (i32, i32) {
    %c0_i32 = arith.constant 0 : i32
    %c0_i32_0 = arith.constant 0 : i32
    %c0_i32_1 = arith.constant 0 : i32
    return %c0_i32, %c0_i32_0 : i32, i32
  }
  func.func @transform_3(%arg0: i32) -> (i32, i32) {
    %c0_i32 = arith.constant 0 : i32
    %c0_i32_0 = arith.constant 0 : i32
    return %arg0, %c0_i32 : i32, i32
  }
}

</mosaic_0001>

<llo_original>
// kernel: tpu_custom_call.1
$region0: #{tpu_custom_call.1}
  #allocation0 [shape = 'u32[]', space=smem, size = 0x4, offset = 0x4, fixed_abs, tag = 'smem constant byte address 0x4 - core index']
  #allocation1 [shape = 'u32[144,128]{1,0:T(1,128)}', space=vmem, size = 0x12000, scoped, tag = 'internal scratch']
  #allocation2 [shape = 'f32[64,32]{1,0:T(8,128)}', space=vmem, size = 0x8000, scoped, tag = 'scratch operand']
  %s0 = inlined_call_operand.vmem [shape: f32[128,32], index: 0, kind: input, shape index: {}]
  %s1 = inlined_call_operand.vmem [shape: f32[32,32], index: 1, kind: input, shape index: {}]
  %s2 = inlined_call_operand.vmem [shape: f32[1,32], index: 2, kind: input, shape index: {}]
  %s3 = inlined_call_operand.hbm [shape: f32[32,128], index: 3, kind: output, shape index: {}]
  %s4 = sld [smem:[#allocation0]]
  $region45: #{tpu_custom_call.1} parent=0
    _
  %s6 = ssub.s32 1, %s4
  %s7 = scalar_select 0, %s6, %s4
  $region1: #{tpu_custom_call.1} parent=0
    #allocation3 [shape = 'u8[16384]{0}', space=vmem, size = 0x4000, scoped, tag = 'output window, operand 0']
    #allocation4 [shape = 's32[2]{0}', space=sflag, size = 0x8, scoped, tag = 'scoped memory for tpu_custom_call.1']
    %8 = vsyncpa [#allocation4], 0
    %s9 = scalar_lea.sflag [#allocation4], 1
    %10 = vsyncpa %s9, 0
    loop: start=0, step=1, limit=4
    $region2: #{tpu_custom_call.1} parent=1 // loop_pre_header
      _
    $region3: #{tpu_custom_call.1} parent=1 // loop_header
      %s12 = sphi 0, %s16
      %p13 = scmp.ge.s32.totalorder %s12, 4
      %s22 = sphi 0, %s24
      %s25 = sphi 0, %s22
      %s26 = sphi 0, %s25
      %s42 = sphi 0, %s26
      %s46 = sphi 0, %s46
      %s48 = sphi 0, %s46
      %s49 = sphi 0, %s48
      %s63 = sphi 0, %s49
      %s67 = sphi 0, %s67
      %s69 = sphi 0, %s67
      %s70 = sphi 0, %s69
      %s84 = sphi 0, %s70
      %s90 = sphi 0, %s92
      %s93 = sphi 0, %s90
      %s94 = sphi 0, %s93
      %s110 = sphi 0, %s94
    $region4: #{tpu_custom_call.1} parent=1 // loop_header_branch
      %15 = sbr.rel (%p13) target = $region8
    $region5: #{tpu_custom_call.1} parent=1 // loop_body
      %s17 = ssub.s32 %s12, 1
      %s18 = ssub.s32 %s12, 2
      %s19 = sadd.s32 %s12, 1
      %s20 = ssub.s32 %s12, %s19
      %p21 = scmp.eq.s32.totalorder %s20, 0
      %s23 = sadd.s32 %s22, 1
      %s24 = scalar_select %p21, %s22, %s23
      %p27 = pneg %p21
      %p28 = scmp.eq.s32.totalorder %s12, 1
      %p29 = por %p27, %p28
      %p30 = scmp.ne.s32.totalorder %s22, %s25
      %p31 = scmp.eq.s32.totalorder %s12, 0
      %p32 = por %p30, %p31
      %p33 = scmp.ne.s32.totalorder %s22, %s25
      %p34 = scmp.eq.s32.totalorder %s17, 1
      %p35 = por %p33, %p34
      %p36 = scmp.ne.s32.totalorder %s25, %s26
      %p37 = scmp.eq.s32.totalorder %s17, 0
      %p38 = por %p36, %p37
      %p39 = scmp.ne.s32.totalorder %s25, %s26
      %p40 = scmp.eq.s32.totalorder %s18, 1
      %p41 = por %p39, %p40
      %p43 = scmp.ne.s32.totalorder %s26, %s42
      %p44 = scmp.eq.s32.totalorder %s18, 0
      %p45 = por %p43, %p44
      %s47 = sadd.s32 %s46, 1
      %p50 = scmp.eq.s32.totalorder %s12, 1
      %p51 = scmp.ne.s32.totalorder %s46, %s48
      %p52 = scmp.eq.s32.totalorder %s12, 0
      %p53 = por %p51, %p52
      %p54 = scmp.ne.s32.totalorder %s46, %s48
      %p55 = scmp.eq.s32.totalorder %s17, 1
      %p56 = por %p54, %p55
      %p57 = scmp.ne.s32.totalorder %s48, %s49
      %p58 = scmp.eq.s32.totalorder %s17, 0
      %p59 = por %p57, %p58
      %p60 = scmp.ne.s32.totalorder %s48, %s49
      %p61 = scmp.eq.s32.totalorder %s18, 1
      %p62 = por %p60, %p61
      %p64 = scmp.ne.s32.totalorder %s49, %s63
      %p65 = scmp.eq.s32.totalorder %s18, 0
      %p66 = por %p64, %p65
      %s68 = sadd.s32 %s67, 1
      %p71 = scmp.eq.s32.totalorder %s12, 1
      %p72 = scmp.ne.s32.totalorder %s67, %s69
      %p73 = scmp.eq.s32.totalorder %s12, 0
      %p74 = por %p72, %p73
      %p75 = scmp.ne.s32.totalorder %s67, %s69
      %p76 = scmp.eq.s32.totalorder %s17, 1
      %p77 = por %p75, %p76
      %p78 = scmp.ne.s32.totalorder %s69, %s70
      %p79 = scmp.eq.s32.totalorder %s17, 0
      %p80 = por %p78, %p79
      %p81 = scmp.ne.s32.totalorder %s69, %s70
      %p82 = scmp.eq.s32.totalorder %s18, 1
      %p83 = por %p81, %p82
      %p85 = scmp.ne.s32.totalorder %s70, %s84
      %p86 = scmp.eq.s32.totalorder %s18, 0
      %p87 = por %p85, %p86
      %s88 = ssub.s32 %s12, %s19
      %p89 = scmp.eq.s32.totalorder %s88, 0
      %s91 = sadd.s32 %s90, 1
      %s92 = scalar_select %p89, %s90, %s91
      %p95 = pneg %p89
      %p96 = scmp.eq.s32.totalorder %s12, 1
      %p97 = por %p95, %p96
      %p98 = scmp.ne.s32.totalorder %s90, %s93
      %p99 = scmp.eq.s32.totalorder %s12, 0
      %p100 = por %p98, %p99
      %p101 = scmp.ne.s32.totalorder %s90, %s93
      %p102 = scmp.eq.s32.totalorder %s17, 1
      %p103 = por %p101, %p102
      %p104 = scmp.ne.s32.totalorder %s93, %s94
      %p105 = scmp.eq.s32.totalorder %s17, 0
      %p106 = por %p104, %p105
      %p107 = scmp.ne.s32.totalorder %s93, %s94
      %p108 = scmp.eq.s32.totalorder %s18, 1
      %p109 = por %p107, %p108
      %p111 = scmp.ne.s32.totalorder %s94, %s110
      %p112 = scmp.eq.s32.totalorder %s18, 0
      %p113 = por %p111, %p112
      %p114 = scmp.le.s32.totalorder 1, %s12
      %p115 = scmp.lt.s32.totalorder %s12, 3
      %p116 = pnand %p114, %p115
      %p117 = pneg %p116
      // Predicated region
      $region9: #{tpu_custom_call.1} parent=5 // pred_check
        _
      $region10: #{tpu_custom_call.1} parent=5 // pred_check_branch
        %119 = sbr.rel (%p116) target = $region12
      $region11: #{tpu_custom_call.1} parent=5 // pred_region
        %s120 = ssub.s32 %s12, 1
        // Predicated region
        $region13: #{tpu_custom_call.1} parent=11 // pred_check
          %p121 = pneg %p59
        $region14: #{tpu_custom_call.1} parent=11 // pred_check_branch
          %123 = sbr.rel (%p121) target = $region16
        $region15: #{tpu_custom_call.1} parent=11 // pred_region
          _
        $region16: #{tpu_custom_call.1} parent=11 // pred_fallthru
          _
        // Predicated region
        $region17: #{tpu_custom_call.1} parent=11 // pred_check
          %p124 = pneg %p80
        $region18: #{tpu_custom_call.1} parent=11 // pred_check_branch
          %126 = sbr.rel (%p124) target = $region20
        $region19: #{tpu_custom_call.1} parent=11 // pred_region
          _
        $region20: #{tpu_custom_call.1} parent=11 // pred_fallthru
          _
      $region12: #{tpu_custom_call.1} parent=5 // pred_fallthru
        _
      %p127 = scmp.lt.s32.totalorder %s12, 2
      // Predicated region
      $region21: #{tpu_custom_call.1} parent=5 // pred_check
        %p128 = pneg %p127
      $region22: #{tpu_custom_call.1} parent=5 // pred_check_branch
        %130 = sbr.rel (%p128) target = $region24
      $region23: #{tpu_custom_call.1} parent=5 // pred_region
        // Predicated region
        $region25: #{tpu_custom_call.1} parent=23 // pred_check
          %p131 = pneg %p32
        $region26: #{tpu_custom_call.1} parent=23 // pred_check_branch
          %133 = sbr.rel (%p131) target = $region28
        $region27: #{tpu_custom_call.1} parent=23 // pred_region
          %s134 = smul.u32 8, %s12
          %p135 = scmp.lt.s32.totalorder %s134, 15
          %s136 = scalar_select %p135, %s134, 15
          %s137 = smul.addr %s136, 8
          %s138 = scalar_lea.vmem %s0, %s137
          %s139 = smul.u32 8, %s12
        $region28: #{tpu_custom_call.1} parent=23 // pred_fallthru
          _
      $region24: #{tpu_custom_call.1} parent=5 // pred_fallthru
        _
      %p140 = scmp.le.s32.totalorder 1, %s12
      %p141 = scmp.lt.s32.totalorder %s12, 3
      %p142 = pnand %p140, %p141
      %p143 = pneg %p142
      // Predicated region
      $region29: #{tpu_custom_call.1} parent=5 // pred_check
        _
      $region30: #{tpu_custom_call.1} parent=5 // pred_check_branch
        %145 = sbr.rel (%p142) target = $region32
      $region31: #{tpu_custom_call.1} parent=5 // pred_region
        %s146 = ssub.s32 %s12, 1
        %s147 = smul.u32 8, %s17
        %p148 = scmp.lt.s32.totalorder %s147, 15
        %s149 = scalar_select %p148, %s147, 15
        %s150 = smul.addr %s149, 8
        %s151 = scalar_lea.vmem %s0, %s150
        %p152 = pneg %p38
        %p153 = pneg %p35
        %p154 = pneg %p59
        %p155 = pneg %p56
        %p156 = pneg %p80
        %p157 = pneg %p77
        %p158 = pneg %p106
        %p159 = pneg %p103
        %s160 = sand.u32 %s93, 1
        %s161 = scalar_lea.sflag [#allocation4], %s160
        %s162 = sand.u32 %s93, 1
        %s163 = smul.addr %s162, 16
        %s164 = scalar_lea.vmem [#allocation3], %s163
        %s165 = smul.u32 8, %s17
        %p166 = scmp.lt.s32.totalorder %s165, 15
        %s167 = scalar_select %p166, %s165, 15
        %s168 = smul.addr %s167, 8
        %s169 = scalar_lea.vmem %s0, %s168
        %s170 = smul.u32 8, %s17
        %s171 = smul.u32 2, %s17
        %v172 = vld [vmem:[%s169] sm:$0xff]
        %v173 = vld [vmem:[%s169 + $0x8] sm:$0xff]
        %v174 = vld [vmem:[%s169 + $0x10] sm:$0xff]
        %v175 = vld [vmem:[%s169 + $0x18] sm:$0xff]
        %v176 = vld [vmem:[%s169 + $0x20] sm:$0xff]
        %v177 = vld [vmem:[%s169 + $0x28] sm:$0xff]
        %v178 = vld [vmem:[%s169 + $0x30] sm:$0xff]
        %v179 = vld [vmem:[%s169 + $0x38] sm:$0xff]
        %v180 = vld [vmem:[%s1] sm:$0xff]
        %v181 = vld [vmem:[%s1 + $0x8] sm:$0xff]
        %v182 = vld [vmem:[%s1 + $0x10] sm:$0xff]
        %v183 = vld [vmem:[%s1 + $0x18] sm:$0xff]
        %v184 = vld [vmem:[%s2] sm:$0x1]
        %v186 = vlaneseq
        %v187 = vshrl.u32 %v186, 7
        %v188 = vsub.s32 0, %v187
        %v189 = vrot.slane %v184, %v188
        %vm191 = vcmask 261120
        %v193 = vsel %vm191, %v172, 0
        %v196 = vsel %vm191, %v173, 0
        %v199 = vsel %vm191, %v174, 0
        %v202 = vsel %vm191, %v175, 0
        %v205 = vsel %vm191, %v176, 0
        %v208 = vsel %vm191, %v177, 0
        %v211 = vsel %vm191, %v178, 0
        %v214 = vsel %vm191, %v179, 0
        %216 = vmatprep.subr.mxu0 0.0
        %217 = vmatpush1.msra.mxu0 %v180
        %218 = vmatprep.subr.mxu0 0.0
        %219 = vmatpush1.msra.mxu0 %v181
        %220 = vmatprep.subr.mxu0 0.0
        %221 = vmatpush1.msra.mxu0 %v182
        %222 = vmatprep.subr.mxu0 0.0
        %223 = vmatpush1.msra.mxu0 %v183
        %224 = vmatprep.subr.mxu0 0.0
        %225 = vmatpush1.msra.mxu0 0.0
        %226 = vmatprep.subr.mxu0 0.0
        %227 = vmatpush1.msra.mxu0 0.0
        %228 = vmatprep.subr.mxu0 0.0
        %229 = vmatpush1.msra.mxu0 0.0
        %230 = vmatprep.subr.mxu0 0.0
        %231 = vmatpush1.msra.mxu0 0.0
        %232 = vmatprep.subr.mxu0 0.0
        %233 = vmatpush1.msra.mxu0 0.0
        %234 = vmatprep.subr.mxu0 0.0
        %235 = vmatpush1.msra.mxu0 0.0
        %236 = vmatprep.subr.mxu0 0.0
        %237 = vmatpush1.msra.mxu0 0.0
        %238 = vmatprep.subr.mxu0 0.0
        %239 = vmatpush1.msra.mxu0 0.0
        %240 = vmatprep.subr.mxu0 0.0
        %241 = vmatpush1.msra.mxu0 0.0
        %242 = vmatprep.subr.mxu0 0.0
        %243 = vmatpush1.msra.mxu0 0.0
        %244 = vmatprep.subr.mxu0 0.0
        %245 = vmatpush1.msra.mxu0 0.0
        %246 = vmatprep.subr.mxu0 0.0
        %247 = vmatpush1.msra.mxu0 0.0
        %248 = vmatprep.subr.mxu0 0.0
        %249 = vmatpush1.msra.mxu0 0.0
        %250 = vmatprep.subr.mxu0 0.0
        %251 = vmatpush1.msra.mxu0 0.0
        %252 = vmatprep.subr.mxu0 0.0
        %253 = vmatpush1.msra.mxu0 0.0
        %254 = vmatprep.subr.mxu0 0.0
        %255 = vmatpush1.msra.mxu0 0.0
        %256 = vmatprep.subr.mxu0 0.0
        %257 = vmatpush1.msra.mxu0 0.0
        %258 = vmatprep.subr.mxu0 0.0
        %259 = vmatpush1.msra.mxu0 0.0
        %260 = vmatprep.subr.mxu0 0.0
        %261 = vmatpush1.msra.mxu0 0.0
        %262 = vmatprep.subr.mxu0 0.0
        %263 = vmatpush1.msra.mxu0 0.0
        %264 = vmatprep.subr.mxu0 0.0
        %265 = vmatpush1.msra.mxu0 0.0
        %266 = vmatprep.subr.mxu0 0.0
        %267 = vmatpush1.msra.mxu0 0.0
        %268 = vmatprep.subr.mxu0 0.0
        %269 = vmatpush1.msra.mxu0 0.0
        %270 = vmatprep.subr.mxu0 0.0
        %271 = vmatpush1.msra.mxu0 0.0
        %272 = vmatprep.subr.mxu0 0.0
        %273 = vmatpush1.msra.mxu0 0.0
        %274 = vmatprep.subr.mxu0 0.0
        %275 = vmatpush1.msra.mxu0 0.0
        %276 = vmatprep.subr.mxu0 0.0
        %277 = vmatpush1.msra.mxu0 0.0
        %278 = vmatprep.subr.mxu0 0.0
        %279 = vmatpush1.msra.mxu0 0.0
        %280 = vmatprep.mubr.f32.mxu0 0.0
        %281 = vmatmul.mubr.f32.gmra.mrb[0].mxu0 %v193
        %v282 = vpop.f32.mrb[0].mxu0
        %v283 = vadd.f32 %v189, %v282
        %v284 = vpop.f32.mrb[0].mxu0
        %285 = vmatprep.mubr.f32.mxu0 0.0
        %286 = vmatmul.mubr.f32.gmra.mrb[0].mxu0 %v196
        %v287 = vpop.f32.mrb[0].mxu0
        %v288 = vadd.f32 %v189, %v287
        %v289 = vpop.f32.mrb[0].mxu0
        %290 = vmatprep.mubr.f32.mxu0 0.0
        %291 = vmatmul.mubr.f32.gmra.mrb[0].mxu0 %v199
        %v292 = vpop.f32.mrb[0].mxu0
        %v293 = vadd.f32 %v189, %v292
        %v294 = vpop.f32.mrb[0].mxu0
        %295 = vmatprep.mubr.f32.mxu0 0.0
        %296 = vmatmul.mubr.f32.gmra.mrb[0].mxu0 %v202
        %v297 = vpop.f32.mrb[0].mxu0
        %v298 = vadd.f32 %v189, %v297
        %v299 = vpop.f32.mrb[0].mxu0
        %300 = vmatprep.mubr.f32.mxu0 0.0
        %301 = vmatmul.mubr.f32.gmra.mrb[0].mxu0 %v205
        %v302 = vpop.f32.mrb[0].mxu0
        %v303 = vadd.f32 %v189, %v302
        %v304 = vpop.f32.mrb[0].mxu0
        %305 = vmatprep.mubr.f32.mxu0 0.0
        %306 = vmatmul.mubr.f32.gmra.mrb[0].mxu0 %v208
        %v307 = vpop.f32.mrb[0].mxu0
        %v308 = vadd.f32 %v189, %v307
        %v309 = vpop.f32.mrb[0].mxu0
        %310 = vmatprep.mubr.f32.mxu0 0.0
        %311 = vmatmul.mubr.f32.gmra.mrb[0].mxu0 %v211
        %v312 = vpop.f32.mrb[0].mxu0
        %v313 = vadd.f32 %v189, %v312
        %v314 = vpop.f32.mrb[0].mxu0
        %315 = vmatprep.mubr.f32.mxu0 0.0
        %316 = vmatmul.mubr.f32.gmra.mrb[0].mxu0 %v214
        %v317 = vpop.f32.mrb[0].mxu0
        %v318 = vadd.f32 %v189, %v317
        %v319 = vpop.f32.mrb[0].mxu0
        %320 = vdwg.mxu0
        %321 = vst.msk [vmem:[#allocation2] sm:$0xff] %vm191, %v283
        %322 = vst.msk [vmem:[#allocation2 + $0x8] sm:$0xff] %vm191, %v288
        %323 = vst.msk [vmem:[#allocation2 + $0x10] sm:$0xff] %vm191, %v293
        %324 = vst.msk [vmem:[#allocation2 + $0x18] sm:$0xff] %vm191, %v298
        %325 = vst.msk [vmem:[#allocation2 + $0x20] sm:$0xff] %vm191, %v303
        %326 = vst.msk [vmem:[#allocation2 + $0x28] sm:$0xff] %vm191, %v308
        %327 = vst.msk [vmem:[#allocation2 + $0x30] sm:$0xff] %vm191, %v313
        %328 = vst.msk [vmem:[#allocation2 + $0x38] sm:$0xff] %vm191, %v318
        %v329 = vld [vmem:[#allocation2] ss:$8 sm:$0xf]
        %v330 = vld [vmem:[#allocation2] ss:$8 sm:$0xf0]
        %v331 = vor.u32 %v329, %v330
        %s332 = scalar_lea.vmem [#allocation2], 1
        %v333 = vld [vmem:[%s332] ss:$8 sm:$0xf]
        %v334 = vld [vmem:[%s332] ss:$8 sm:$0xf0]
        %v335 = vor.u32 %v333, %v334
        %s336 = scalar_lea.vmem [#allocation2], 2
        %v337 = vld [vmem:[%s336] ss:$8 sm:$0xf]
        %v338 = vld [vmem:[%s336] ss:$8 sm:$0xf0]
        %v339 = vor.u32 %v337, %v338
        %s340 = scalar_lea.vmem [#allocation2], 3
        %v341 = vld [vmem:[%s340] ss:$8 sm:$0xf]
        %v342 = vld [vmem:[%s340] ss:$8 sm:$0xf0]
        %v343 = vor.u32 %v341, %v342
        %s344 = scalar_lea.vmem [#allocation2], 4
        %v345 = vld [vmem:[%s344] ss:$8 sm:$0xf]
        %v346 = vld [vmem:[%s344] ss:$8 sm:$0xf0]
        %v347 = vor.u32 %v345, %v346
        %s348 = scalar_lea.vmem [#allocation2], 5
        %v349 = vld [vmem:[%s348] ss:$8 sm:$0xf]
        %v350 = vld [vmem:[%s348] ss:$8 sm:$0xf0]
        %v351 = vor.u32 %v349, %v350
        %s352 = scalar_lea.vmem [#allocation2], 6
        %v353 = vld [vmem:[%s352] ss:$8 sm:$0xf]
        %v354 = vld [vmem:[%s352] ss:$8 sm:$0xf0]
        %v355 = vor.u32 %v353, %v354
        %s356 = scalar_lea.vmem [#allocation2], 7
        %v357 = vld [vmem:[%s356] ss:$8 sm:$0xf]
        %v358 = vld [vmem:[%s356] ss:$8 sm:$0xf0]
        %v359 = vor.u32 %v357, %v358
        %361 = vrot.lane.b32.xlu0 %v335, 16
        %v362 = vpop.permute.xlu0 %361
        %365 = vrot.lane.b32.xlu0 %v339, 32
        %v366 = vpop.permute.xlu0 %365
        %369 = vrot.lane.b32.xlu0 %v343, 48
        %v370 = vpop.permute.xlu0 %369
        %373 = vrot.lane.b32.xlu0 %v347, 64
        %v374 = vpop.permute.xlu0 %373
        %377 = vrot.lane.b32.xlu0 %v351, 80
        %v378 = vpop.permute.xlu0 %377
        %381 = vrot.lane.b32.xlu0 %v355, 96
        %v382 = vpop.permute.xlu0 %381
        %385 = vrot.lane.b32.xlu0 %v359, 112
        %v386 = vpop.permute.xlu0 %385
        %vm388 = vcmask 130048
        %v389 = vsel %vm388, %v331, %v362
        %v390 = vsel %vm191, %v389, %v366
        %vm391 = vcmask 392192
        %v392 = vsel %vm391, %v390, %v370
        %vm393 = vcmask 523264
        %v394 = vsel %vm393, %v392, %v374
        %vm395 = vcmask 654336
        %v396 = vsel %vm395, %v394, %v378
        %vm397 = vcmask 785408
        %v398 = vsel %vm397, %v396, %v382
        %vm399 = vcmask 916480
        %v400 = vsel %vm399, %v398, %v386
        %401 = vst [vmem:[%s164] ss:$2 sm:$0xff] %v400
        %403 = vrot.lane.b32.xlu0 %v331, 112
        %v404 = vpop.permute.xlu0 %403
        %406 = vrot.lane.b32.xlu0 %v339, 16
        %v407 = vpop.permute.xlu0 %406
        %409 = vrot.lane.b32.xlu0 %v343, 32
        %v410 = vpop.permute.xlu0 %409
        %412 = vrot.lane.b32.xlu0 %v347, 48
        %v413 = vpop.permute.xlu0 %412
        %415 = vrot.lane.b32.xlu0 %v351, 64
        %v416 = vpop.permute.xlu0 %415
        %418 = vrot.lane.b32.xlu0 %v355, 80
        %v419 = vpop.permute.xlu0 %418
        %421 = vrot.lane.b32.xlu0 %v359, 96
        %v422 = vpop.permute.xlu0 %421
        %v424 = vsel %vm388, %v404, %v335
        %v425 = vsel %vm191, %v424, %v407
        %v426 = vsel %vm391, %v425, %v410
        %v427 = vsel %vm393, %v426, %v413
        %v428 = vsel %vm395, %v427, %v416
        %v429 = vsel %vm397, %v428, %v419
        %v430 = vsel %vm399, %v429, %v422
        %s431 = scalar_lea.vmem %s164, 1 [#allocation3]
        %432 = vst [vmem:[%s431] ss:$2 sm:$0xff] %v430
        %s433 = sand.u32 %s93, 1
        %s434 = scalar_lea.sflag [#allocation4], %s433
        %s435 = sand.u32 %s93, 1
        %s436 = smul.addr %s435, 16
        %s437 = scalar_lea.vmem [#allocation3], %s436
        // Predicated region
        $region33: #{tpu_custom_call.1} parent=31 // pred_check
          %p438 = pneg %p103
        $region34: #{tpu_custom_call.1} parent=31 // pred_check_branch
          %440 = sbr.rel (%p438) target = $region36
        $region35: #{tpu_custom_call.1} parent=31 // pred_region
          %s441 = smul.u32 2, %s17
          %s443 = ssub.s32 256, 256
          %444 = vsyncadd %s434, %s443
          %s445 = smul.addr %s441, 128
          %s446 = scalar_lea.hbm %s3, %s445
          %s447 = sshll.u32 %s437, 4
          %s448 = int_to_ptr.vmem [resolvable:$true] %s447
          %453 = dma.vmem_to_hbm [thread:$0]  %s448, 256, %s446, %s434, 128, 128, 8
        $region36: #{tpu_custom_call.1} parent=31 // pred_fallthru
          _
      $region32: #{tpu_custom_call.1} parent=5 // pred_fallthru
        _
      %p454 = scmp.le.s32.totalorder 2, %s12
      // Predicated region
      $region37: #{tpu_custom_call.1} parent=5 // pred_check
        %p455 = pneg %p454
      $region38: #{tpu_custom_call.1} parent=5 // pred_check_branch
        %457 = sbr.rel (%p455) target = $region40
      $region39: #{tpu_custom_call.1} parent=5 // pred_region
        %s458 = ssub.s32 %s12, 2
        // Predicated region
        $region41: #{tpu_custom_call.1} parent=39 // pred_check
          %p459 = pneg %p109
        $region42: #{tpu_custom_call.1} parent=39 // pred_check_branch
          %461 = sbr.rel (%p459) target = $region44
        $region43: #{tpu_custom_call.1} parent=39 // pred_region
          %s462 = sand.u32 %s94, 1
          %s463 = scalar_lea.sflag [#allocation4], %s462
          %s464 = sand.u32 %s94, 1
          %s465 = smul.addr %s464, 16
          %s466 = scalar_lea.vmem [#allocation3], %s465
          %467 = dma.done %s463, 256
        $region44: #{tpu_custom_call.1} parent=39 // pred_fallthru
          _
      $region40: #{tpu_custom_call.1} parent=5 // pred_fallthru
        _
    $region6: #{tpu_custom_call.1} parent=1 // loop_footer
      %s16 = sadd.s32 1, %s12
    $region7: #{tpu_custom_call.1} parent=1 // loop_footer_branch
      %11 = sbr.rel target = $region3
    $region8: #{tpu_custom_call.1} parent=1 // loop_exit
      _
    %468 = vsyncpa [#allocation4], 1
    %s469 = scalar_lea.sflag [#allocation4], 1
    %470 = vsyncpa %s469, 1

// kernel: tpu_custom_call.1
$region0: #{tpu_custom_call.1}
  #allocation0 [shape = 'u32[]', space=smem, size = 0x4, offset = 0x4, fixed_abs, tag = 'smem constant byte address 0x4 - core index']
  #allocation1 [shape = 'u32[144,128]{1,0:T(1,128)}', space=vmem, size = 0x12000, scoped, tag = 'internal scratch']
  #allocation2 [shape = 'f32[64,32]{1,0:T(8,128)}', space=vmem, size = 0x8000, scoped, tag = 'scratch operand']
  %s0 = inlined_call_operand.vmem [shape: f32[128,32], index: 0, kind: input, shape index: {}]
  %s1 = inlined_call_operand.vmem [shape: f32[32,32], index: 1, kind: input, shape index: {}]
  %s2 = inlined_call_operand.vmem [shape: f32[1,32], index: 2, kind: input, shape index: {}]
  %s3 = inlined_call_operand.hbm [shape: f32[32,128], index: 3, kind: output, shape index: {}]
  %s4 = sld [smem:[#allocation0]]
  $region45: #{tpu_custom_call.1} parent=0
    _
  %s6 = ssub.s32 1, %s4
  %s7 = scalar_select 0, %s6, %s4
  $region1: #{tpu_custom_call.1} parent=0
    #allocation3 [shape = 'u8[16384]{0}', space=vmem, size = 0x4000, scoped, tag = 'output window, operand 0']
    #allocation4 [shape = 's32[2]{0}', space=sflag, size = 0x8, scoped, tag = 'scoped memory for tpu_custom_call.1']
    %8 = vsyncpa [#allocation4], 0
    %s9 = scalar_lea.sflag [#allocation4], 1
    %10 = vsyncpa %s9, 0
    loop: start=0, step=1, limit=4
    $region2: #{tpu_custom_call.1} parent=1 // loop_pre_header
      _
    $region3: #{tpu_custom_call.1} parent=1 // loop_header
      %s12 = sphi 0, %s16
      %p13 = scmp.ge.s32.totalorder %s12, 4
      %s22 = sphi 0, %s24
      %s25 = sphi 0, %s22
      %s26 = sphi 0, %s25
      %s42 = sphi 0, %s26
      %s46 = sphi 0, %s46
      %s48 = sphi 0, %s46
      %s49 = sphi 0, %s48
      %s63 = sphi 0, %s49
      %s67 = sphi 0, %s67
      %s69 = sphi 0, %s67
      %s70 = sphi 0, %s69
      %s84 = sphi 0, %s70
      %s90 = sphi 0, %s92
      %s93 = sphi 0, %s90
      %s94 = sphi 0, %s93
      %s110 = sphi 0, %s94
    $region4: #{tpu_custom_call.1} parent=1 // loop_header_branch
      %15 = sbr.rel (%p13) target = $region8
    $region5: #{tpu_custom_call.1} parent=1 // loop_body
      %s17 = ssub.s32 %s12, 1
      %s18 = ssub.s32 %s12, 2
      %s19 = sadd.s32 %s12, 1
      %s20 = ssub.s32 %s12, %s19
      %p21 = scmp.eq.s32.totalorder %s20, 0
      %s23 = sadd.s32 %s22, 1
      %s24 = scalar_select %p21, %s22, %s23
      %p27 = pneg %p21
      %p28 = scmp.eq.s32.totalorder %s12, 1
      %p29 = por %p27, %p28
      %p30 = scmp.ne.s32.totalorder %s22, %s25
      %p31 = scmp.eq.s32.totalorder %s12, 0
      %p32 = por %p30, %p31
      %p33 = scmp.ne.s32.totalorder %s22, %s25
      %p34 = scmp.eq.s32.totalorder %s17, 1
      %p35 = por %p33, %p34
      %p36 = scmp.ne.s32.totalorder %s25, %s26
      %p37 = scmp.eq.s32.totalorder %s17, 0
      %p38 = por %p36, %p37
      %p39 = scmp.ne.s32.totalorder %s25, %s26
      %p40 = scmp.eq.s32.totalorder %s18, 1
      %p41 = por %p39, %p40
      %p43 = scmp.ne.s32.totalorder %s26, %s42
      %p44 = scmp.eq.s32.totalorder %s18, 0
      %p45 = por %p43, %p44
      %s47 = sadd.s32 %s46, 1
      %p50 = scmp.eq.s32.totalorder %s12, 1
      %p51 = scmp.ne.s32.totalorder %s46, %s48
      %p52 = scmp.eq.s32.totalorder %s12, 0
      %p53 = por %p51, %p52
      %p54 = scmp.ne.s32.totalorder %s46, %s48
      %p55 = scmp.eq.s32.totalorder %s17, 1
      %p56 = por %p54, %p55
      %p57 = scmp.ne.s32.totalorder %s48, %s49
      %p58 = scmp.eq.s32.totalorder %s17, 0
      %p59 = por %p57, %p58
      %p60 = scmp.ne.s32.totalorder %s48, %s49
      %p61 = scmp.eq.s32.totalorder %s18, 1
      %p62 = por %p60, %p61
      %p64 = scmp.ne.s32.totalorder %s49, %s63
      %p65 = scmp.eq.s32.totalorder %s18, 0
      %p66 = por %p64, %p65
      %s68 = sadd.s32 %s67, 1
      %p71 = scmp.eq.s32.totalorder %s12, 1
      %p72 = scmp.ne.s32.totalorder %s67, %s69
      %p73 = scmp.eq.s32.totalorder %s12, 0
      %p74 = por %p72, %p73
      %p75 = scmp.ne.s32.totalorder %s67, %s69
      %p76 = scmp.eq.s32.totalorder %s17, 1
      %p77 = por %p75, %p76
      %p78 = scmp.ne.s32.totalorder %s69, %s70
      %p79 = scmp.eq.s32.totalorder %s17, 0
      %p80 = por %p78, %p79
      %p81 = scmp.ne.s32.totalorder %s69, %s70
      %p82 = scmp.eq.s32.totalorder %s18, 1
      %p83 = por %p81, %p82
      %p85 = scmp.ne.s32.totalorder %s70, %s84
      %p86 = scmp.eq.s32.totalorder %s18, 0
      %p87 = por %p85, %p86
      %s88 = ssub.s32 %s12, %s19
      %p89 = scmp.eq.s32.totalorder %s88, 0
      %s91 = sadd.s32 %s90, 1
      %s92 = scalar_select %p89, %s90, %s91
      %p95 = pneg %p89
      %p96 = scmp.eq.s32.totalorder %s12, 1
      %p97 = por %p95, %p96
      %p98 = scmp.ne.s32.totalorder %s90, %s93
      %p99 = scmp.eq.s32.totalorder %s12, 0
      %p100 = por %p98, %p99
      %p101 = scmp.ne.s32.totalorder %s90, %s93
      %p102 = scmp.eq.s32.totalorder %s17, 1
      %p103 = por %p101, %p102
      %p104 = scmp.ne.s32.totalorder %s93, %s94
      %p105 = scmp.eq.s32.totalorder %s17, 0
      %p106 = por %p104, %p105
      %p107 = scmp.ne.s32.totalorder %s93, %s94
      %p108 = scmp.eq.s32.totalorder %s18, 1
      %p109 = por %p107, %p108
      %p111 = scmp.ne.s32.totalorder %s94, %s110
      %p112 = scmp.eq.s32.totalorder %s18, 0
      %p113 = por %p111, %p112
      %p114 = scmp.le.s32.totalorder 1, %s12
      %p115 = scmp.lt.s32.totalorder %s12, 3
      %p116 = pnand %p114, %p115
      %p117 = pneg %p116
      // Predicated region
      $region9: #{tpu_custom_call.1} parent=5 // pred_check
        _
      $region10: #{tpu_custom_call.1} parent=5 // pred_check_branch
        %119 = sbr.rel (%p116) target = $region12
      $region11: #{tpu_custom_call.1} parent=5 // pred_region
        %s120 = ssub.s32 %s12, 1
        // Predicated region
        $region13: #{tpu_custom_call.1} parent=11 // pred_check
          %p121 = pneg %p59
        $region14: #{tpu_custom_call.1} parent=11 // pred_check_branch
          %123 = sbr.rel (%p121) target = $region16
        $region15: #{tpu_custom_call.1} parent=11 // pred_region
          _
        $region16: #{tpu_custom_call.1} parent=11 // pred_fallthru
          _
        // Predicated region
        $region17: #{tpu_custom_call.1} parent=11 // pred_check
          %p124 = pneg %p80
        $region18: #{tpu_custom_call.1} parent=11 // pred_check_branch
          %126 = sbr.rel (%p124) target = $region20
        $region19: #{tpu_custom_call.1} parent=11 // pred_region
          _
        $region20: #{tpu_custom_call.1} parent=11 // pred_fallthru
          _
      $region12: #{tpu_custom_call.1} parent=5 // pred_fallthru
        _
      %p127 = scmp.lt.s32.totalorder %s12, 2
      // Predicated region
      $region21: #{tpu_custom_call.1} parent=5 // pred_check
        %p128 = pneg %p127
      $region22: #{tpu_custom_call.1} parent=5 // pred_check_branch
        %130 = sbr.rel (%p128) target = $region24
      $region23: #{tpu_custom_call.1} parent=5 // pred_region
        // Predicated region
        $region25: #{tpu_custom_call.1} parent=23 // pred_check
          %p131 = pneg %p32
        $region26: #{tpu_custom_call.1} parent=23 // pred_check_branch
          %133 = sbr.rel (%p131) target = $region28
        $region27: #{tpu_custom_call.1} parent=23 // pred_region
          %s134 = smul.u32 8, %s12
          %p135 = scmp.lt.s32.totalorder %s134, 15
          %s136 = scalar_select %p135, %s134, 15
          %s137 = smul.addr %s136, 8
          %s138 = scalar_lea.vmem %s0, %s137
          %s139 = smul.u32 8, %s12
        $region28: #{tpu_custom_call.1} parent=23 // pred_fallthru
          _
      $region24: #{tpu_custom_call.1} parent=5 // pred_fallthru
        _
      %p140 = scmp.le.s32.totalorder 1, %s12
      %p141 = scmp.lt.s32.totalorder %s12, 3
      %p142 = pnand %p140, %p141
      %p143 = pneg %p142
      // Predicated region
      $region29: #{tpu_custom_call.1} parent=5 // pred_check
        _
      $region30: #{tpu_custom_call.1} parent=5 // pred_check_branch
        %145 = sbr.rel (%p142) target = $region32
      $region31: #{tpu_custom_call.1} parent=5 // pred_region
        %s146 = ssub.s32 %s12, 1
        %s147 = smul.u32 8, %s17
        %p148 = scmp.lt.s32.totalorder %s147, 15
        %s149 = scalar_select %p148, %s147, 15
        %s150 = smul.addr %s149, 8
        %s151 = scalar_lea.vmem %s0, %s150
        %p152 = pneg %p38
        %p153 = pneg %p35
        %p154 = pneg %p59
        %p155 = pneg %p56
        %p156 = pneg %p80
        %p157 = pneg %p77
        %p158 = pneg %p106
        %p159 = pneg %p103
        %s160 = sand.u32 %s93, 1
        %s161 = scalar_lea.sflag [#allocation4], %s160
        %s162 = sand.u32 %s93, 1
        %s163 = smul.addr %s162, 16
        %s164 = scalar_lea.vmem [#allocation3], %s163
        %s165 = smul.u32 8, %s17
        %p166 = scmp.lt.s32.totalorder %s165, 15
        %s167 = scalar_select %p166, %s165, 15
        %s168 = smul.addr %s167, 8
        %s169 = scalar_lea.vmem %s0, %s168
        %s170 = smul.u32 8, %s17
        %s171 = smul.u32 2, %s17
        %v172 = vld [vmem:[%s169] sm:$0xff]
        %v173 = vld [vmem:[%s169 + $0x8] sm:$0xff]
        %v174 = vld [vmem:[%s169 + $0x10] sm:$0xff]
        %v175 = vld [vmem:[%s169 + $0x18] sm:$0xff]
        %v176 = vld [vmem:[%s169 + $0x20] sm:$0xff]
        %v177 = vld [vmem:[%s169 + $0x28] sm:$0xff]
        %v178 = vld [vmem:[%s169 + $0x30] sm:$0xff]
        %v179 = vld [vmem:[%s169 + $0x38] sm:$0xff]
        %v180 = vld [vmem:[%s1] sm:$0xff]
        %v181 = vld [vmem:[%s1 + $0x8] sm:$0xff]
        %v182 = vld [vmem:[%s1 + $0x10] sm:$0xff]
        %v183 = vld [vmem:[%s1 + $0x18] sm:$0xff]
        %v184 = vld [vmem:[%s2] sm:$0x1]
        %v186 = vlaneseq
        %v187 = vshrl.u32 %v186, 7
        %v188 = vsub.s32 0, %v187
        %v189 = vrot.slane %v184, %v188
        %vm191 = vcmask 261120
        %v193 = vsel %vm191, %v172, 0
        %v196 = vsel %vm191, %v173, 0
        %v199 = vsel %vm191, %v174, 0
        %v202 = vsel %vm191, %v175, 0
        %v205 = vsel %vm191, %v176, 0
        %v208 = vsel %vm191, %v177, 0
        %v211 = vsel %vm191, %v178, 0
        %v214 = vsel %vm191, %v179, 0
        %216 = vmatprep.subr.mxu0 0.0
        %217 = vmatpush1.msra.mxu0 %v180
        %218 = vmatprep.subr.mxu0 0.0
        %219 = vmatpush1.msra.mxu0 %v181
        %220 = vmatprep.subr.mxu0 0.0
        %221 = vmatpush1.msra.mxu0 %v182
        %222 = vmatprep.subr.mxu0 0.0
        %223 = vmatpush1.msra.mxu0 %v183
        %224 = vmatprep.subr.mxu0 0.0
        %225 = vmatpush1.msra.mxu0 0.0
        %226 = vmatprep.subr.mxu0 0.0
        %227 = vmatpush1.msra.mxu0 0.0
        %228 = vmatprep.subr.mxu0 0.0
        %229 = vmatpush1.msra.mxu0 0.0
        %230 = vmatprep.subr.mxu0 0.0
        %231 = vmatpush1.msra.mxu0 0.0
        %232 = vmatprep.subr.mxu0 0.0
        %233 = vmatpush1.msra.mxu0 0.0
        %234 = vmatprep.subr.mxu0 0.0
        %235 = vmatpush1.msra.mxu0 0.0
        %236 = vmatprep.subr.mxu0 0.0
        %237 = vmatpush1.msra.mxu0 0.0
        %238 = vmatprep.subr.mxu0 0.0
        %239 = vmatpush1.msra.mxu0 0.0
        %240 = vmatprep.subr.mxu0 0.0
        %241 = vmatpush1.msra.mxu0 0.0
        %242 = vmatprep.subr.mxu0 0.0
        %243 = vmatpush1.msra.mxu0 0.0
        %244 = vmatprep.subr.mxu0 0.0
        %245 = vmatpush1.msra.mxu0 0.0
        %246 = vmatprep.subr.mxu0 0.0
        %247 = vmatpush1.msra.mxu0 0.0
        %248 = vmatprep.subr.mxu0 0.0
        %249 = vmatpush1.msra.mxu0 0.0
        %250 = vmatprep.subr.mxu0 0.0
        %251 = vmatpush1.msra.mxu0 0.0
        %252 = vmatprep.subr.mxu0 0.0
        %253 = vmatpush1.msra.mxu0 0.0
        %254 = vmatprep.subr.mxu0 0.0
        %255 = vmatpush1.msra.mxu0 0.0
        %256 = vmatprep.subr.mxu0 0.0
        %257 = vmatpush1.msra.mxu0 0.0
        %258 = vmatprep.subr.mxu0 0.0
        %259 = vmatpush1.msra.mxu0 0.0
        %260 = vmatprep.subr.mxu0 0.0
        %261 = vmatpush1.msra.mxu0 0.0
        %262 = vmatprep.subr.mxu0 0.0
        %263 = vmatpush1.msra.mxu0 0.0
        %264 = vmatprep.subr.mxu0 0.0
        %265 = vmatpush1.msra.mxu0 0.0
        %266 = vmatprep.subr.mxu0 0.0
        %267 = vmatpush1.msra.mxu0 0.0
        %268 = vmatprep.subr.mxu0 0.0
        %269 = vmatpush1.msra.mxu0 0.0
        %270 = vmatprep.subr.mxu0 0.0
        %271 = vmatpush1.msra.mxu0 0.0
        %272 = vmatprep.subr.mxu0 0.0
        %273 = vmatpush1.msra.mxu0 0.0
        %274 = vmatprep.subr.mxu0 0.0
        %275 = vmatpush1.msra.mxu0 0.0
        %276 = vmatprep.subr.mxu0 0.0
        %277 = vmatpush1.msra.mxu0 0.0
        %278 = vmatprep.subr.mxu0 0.0
        %279 = vmatpush1.msra.mxu0 0.0
        %280 = vmatprep.mubr.f32.mxu0 0.0
        %281 = vmatmul.mubr.f32.gmra.mrb[0].mxu0 %v193
        %v282 = vpop.f32.mrb[0].mxu0
        %v283 = vadd.f32 %v189, %v282
        %v284 = vpop.f32.mrb[0].mxu0
        %285 = vmatprep.mubr.f32.mxu0 0.0
        %286 = vmatmul.mubr.f32.gmra.mrb[0].mxu0 %v196
        %v287 = vpop.f32.mrb[0].mxu0
        %v288 = vadd.f32 %v189, %v287
        %v289 = vpop.f32.mrb[0].mxu0
        %290 = vmatprep.mubr.f32.mxu0 0.0
        %291 = vmatmul.mubr.f32.gmra.mrb[0].mxu0 %v199
        %v292 = vpop.f32.mrb[0].mxu0
        %v293 = vadd.f32 %v189, %v292
        %v294 = vpop.f32.mrb[0].mxu0
        %295 = vmatprep.mubr.f32.mxu0 0.0
        %296 = vmatmul.mubr.f32.gmra.mrb[0].mxu0 %v202
        %v297 = vpop.f32.mrb[0].mxu0
        %v298 = vadd.f32 %v189, %v297
        %v299 = vpop.f32.mrb[0].mxu0
        %300 = vmatprep.mubr.f32.mxu0 0.0
        %301 = vmatmul.mubr.f32.gmra.mrb[0].mxu0 %v205
        %v302 = vpop.f32.mrb[0].mxu0
        %v303 = vadd.f32 %v189, %v302
        %v304 = vpop.f32.mrb[0].mxu0
        %305 = vmatprep.mubr.f32.mxu0 0.0
        %306 = vmatmul.mubr.f32.gmra.mrb[0].mxu0 %v208
        %v307 = vpop.f32.mrb[0].mxu0
        %v308 = vadd.f32 %v189, %v307
        %v309 = vpop.f32.mrb[0].mxu0
        %310 = vmatprep.mubr.f32.mxu0 0.0
        %311 = vmatmul.mubr.f32.gmra.mrb[0].mxu0 %v211
        %v312 = vpop.f32.mrb[0].mxu0
        %v313 = vadd.f32 %v189, %v312
        %v314 = vpop.f32.mrb[0].mxu0
        %315 = vmatprep.mubr.f32.mxu0 0.0
        %316 = vmatmul.mubr.f32.gmra.mrb[0].mxu0 %v214
        %v317 = vpop.f32.mrb[0].mxu0
        %v318 = vadd.f32 %v189, %v317
        %v319 = vpop.f32.mrb[0].mxu0
        %320 = vdwg.mxu0
        %321 = vst.msk [vmem:[#allocation2] sm:$0xff] %vm191, %v283
        %322 = vst.msk [vmem:[#allocation2 + $0x8] sm:$0xff] %vm191, %v288
        %323 = vst.msk [vmem:[#allocation2 + $0x10] sm:$0xff] %vm191, %v293
        %324 = vst.msk [vmem:[#allocation2 + $0x18] sm:$0xff] %vm191, %v298
        %325 = vst.msk [vmem:[#allocation2 + $0x20] sm:$0xff] %vm191, %v303
        %326 = vst.msk [vmem:[#allocation2 + $0x28] sm:$0xff] %vm191, %v308
        %327 = vst.msk [vmem:[#allocation2 + $0x30] sm:$0xff] %vm191, %v313
        %328 = vst.msk [vmem:[#allocation2 + $0x38] sm:$0xff] %vm191, %v318
        %v329 = vld [vmem:[#allocation2] ss:$8 sm:$0xf]
        %v330 = vld [vmem:[#allocation2] ss:$8 sm:$0xf0]
        %v331 = vor.u32 %v329, %v330
        %s332 = scalar_lea.vmem [#allocation2], 1
        %v333 = vld [vmem:[%s332] ss:$8 sm:$0xf]
        %v334 = vld [vmem:[%s332] ss:$8 sm:$0xf0]
        %v335 = vor.u32 %v333, %v334
        %s336 = scalar_lea.vmem [#allocation2], 2
        %v337 = vld [vmem:[%s336] ss:$8 sm:$0xf]
        %v338 = vld [vmem:[%s336] ss:$8 sm:$0xf0]
        %v339 = vor.u32 %v337, %v338
        %s340 = scalar_lea.vmem [#allocation2], 3
        %v341 = vld [vmem:[%s340] ss:$8 sm:$0xf]
        %v342 = vld [vmem:[%s340] ss:$8 sm:$0xf0]
        %v343 = vor.u32 %v341, %v342
        %s344 = scalar_lea.vmem [#allocation2], 4
        %v345 = vld [vmem:[%s344] ss:$8 sm:$0xf]
        %v346 = vld [vmem:[%s344] ss:$8 sm:$0xf0]
        %v347 = vor.u32 %v345, %v346
        %s348 = scalar_lea.vmem [#allocation2], 5
        %v349 = vld [vmem:[%s348] ss:$8 sm:$0xf]
        %v350 = vld [vmem:[%s348] ss:$8 sm:$0xf0]
        %v351 = vor.u32 %v349, %v350
        %s352 = scalar_lea.vmem [#allocation2], 6
        %v353 = vld [vmem:[%s352] ss:$8 sm:$0xf]
        %v354 = vld [vmem:[%s352] ss:$8 sm:$0xf0]
        %v355 = vor.u32 %v353, %v354
        %s356 = scalar_lea.vmem [#allocation2], 7
        %v357 = vld [vmem:[%s356] ss:$8 sm:$0xf]
        %v358 = vld [vmem:[%s356] ss:$8 sm:$0xf0]
        %v359 = vor.u32 %v357, %v358
        %361 = vrot.lane.b32.xlu0 %v335, 16
        %v362 = vpop.permute.xlu0 %361
        %365 = vrot.lane.b32.xlu0 %v339, 32
        %v366 = vpop.permute.xlu0 %365
        %369 = vrot.lane.b32.xlu0 %v343, 48
        %v370 = vpop.permute.xlu0 %369
        %373 = vrot.lane.b32.xlu0 %v347, 64
        %v374 = vpop.permute.xlu0 %373
        %377 = vrot.lane.b32.xlu0 %v351, 80
        %v378 = vpop.permute.xlu0 %377
        %381 = vrot.lane.b32.xlu0 %v355, 96
        %v382 = vpop.permute.xlu0 %381
        %385 = vrot.lane.b32.xlu0 %v359, 112
        %v386 = vpop.permute.xlu0 %385
        %vm388 = vcmask 130048
        %v389 = vsel %vm388, %v331, %v362
        %v390 = vsel %vm191, %v389, %v366
        %vm391 = vcmask 392192
        %v392 = vsel %vm391, %v390, %v370
        %vm393 = vcmask 523264
        %v394 = vsel %vm393, %v392, %v374
        %vm395 = vcmask 654336
        %v396 = vsel %vm395, %v394, %v378
        %vm397 = vcmask 785408
        %v398 = vsel %vm397, %v396, %v382
        %vm399 = vcmask 916480
        %v400 = vsel %vm399, %v398, %v386
        %401 = vst [vmem:[%s164] ss:$2 sm:$0xff] %v400
        %403 = vrot.lane.b32.xlu0 %v331, 112
        %v404 = vpop.permute.xlu0 %403
        %406 = vrot.lane.b32.xlu0 %v339, 16
        %v407 = vpop.permute.xlu0 %406
        %409 = vrot.lane.b32.xlu0 %v343, 32
        %v410 = vpop.permute.xlu0 %409
        %412 = vrot.lane.b32.xlu0 %v347, 48
        %v413 = vpop.permute.xlu0 %412
        %415 = vrot.lane.b32.xlu0 %v351, 64
        %v416 = vpop.permute.xlu0 %415
        %418 = vrot.lane.b32.xlu0 %v355, 80
        %v419 = vpop.permute.xlu0 %418
        %421 = vrot.lane.b32.xlu0 %v359, 96
        %v422 = vpop.permute.xlu0 %421
        %v424 = vsel %vm388, %v404, %v335
        %v425 = vsel %vm191, %v424, %v407
        %v426 = vsel %vm391, %v425, %v410
        %v427 = vsel %vm393, %v426, %v413
        %v428 = vsel %vm395, %v427, %v416
        %v429 = vsel %vm397, %v428, %v419
        %v430 = vsel %vm399, %v429, %v422
        %s431 = scalar_lea.vmem %s164, 1 [#allocation3]
        %432 = vst [vmem:[%s431] ss:$2 sm:$0xff] %v430
        %s433 = sand.u32 %s93, 1
        %s434 = scalar_lea.sflag [#allocation4], %s433
        %s435 = sand.u32 %s93, 1
        %s436 = smul.addr %s435, 16
        %s437 = scalar_lea.vmem [#allocation3], %s436
        // Predicated region
        $region33: #{tpu_custom_call.1} parent=31 // pred_check
          %p438 = pneg %p103
        $region34: #{tpu_custom_call.1} parent=31 // pred_check_branch
          %440 = sbr.rel (%p438) target = $region36
        $region35: #{tpu_custom_call.1} parent=31 // pred_region
          %s441 = smul.u32 2, %s17
          %s443 = ssub.s32 256, 256
          %444 = vsyncadd %s434, %s443
          %s445 = smul.addr %s441, 128
          %s446 = scalar_lea.hbm %s3, %s445
          %s447 = sshll.u32 %s437, 4
          %s448 = int_to_ptr.vmem [resolvable:$true] %s447
          %453 = dma.vmem_to_hbm [thread:$0]  %s448, 256, %s446, %s434, 128, 128, 8
        $region36: #{tpu_custom_call.1} parent=31 // pred_fallthru
          _
      $region32: #{tpu_custom_call.1} parent=5 // pred_fallthru
        _
      %p454 = scmp.le.s32.totalorder 2, %s12
      // Predicated region
      $region37: #{tpu_custom_call.1} parent=5 // pred_check
        %p455 = pneg %p454
      $region38: #{tpu_custom_call.1} parent=5 // pred_check_branch
        %457 = sbr.rel (%p455) target = $region40
      $region39: #{tpu_custom_call.1} parent=5 // pred_region
        %s458 = ssub.s32 %s12, 2
        // Predicated region
        $region41: #{tpu_custom_call.1} parent=39 // pred_check
          %p459 = pneg %p109
        $region42: #{tpu_custom_call.1} parent=39 // pred_check_branch
          %461 = sbr.rel (%p459) target = $region44
        $region43: #{tpu_custom_call.1} parent=39 // pred_region
          %s462 = sand.u32 %s94, 1
          %s463 = scalar_lea.sflag [#allocation4], %s462
          %s464 = sand.u32 %s94, 1
          %s465 = smul.addr %s464, 16
          %s466 = scalar_lea.vmem [#allocation3], %s465
          %467 = dma.done %s463, 256
        $region44: #{tpu_custom_call.1} parent=39 // pred_fallthru
          _
      $region40: #{tpu_custom_call.1} parent=5 // pred_fallthru
        _
    $region6: #{tpu_custom_call.1} parent=1 // loop_footer
      %s16 = sadd.s32 1, %s12
    $region7: #{tpu_custom_call.1} parent=1 // loop_footer_branch
      %11 = sbr.rel target = $region3
    $region8: #{tpu_custom_call.1} parent=1 // loop_exit
      _
    %468 = vsyncpa [#allocation4], 1
    %s469 = scalar_lea.sflag [#allocation4], 1
    %470 = vsyncpa %s469, 1

// kernel: tpu_custom_call.1
$region0: #{tpu_custom_call.1}
  #allocation0 [shape = 'u32[]', space=smem, size = 0x4, offset = 0x4, fixed_abs, tag = 'smem constant byte address 0x4 - core index']
  #allocation1 [shape = 'u32[144,128]{1,0:T(1,128)}', space=vmem, size = 0x12000, scoped, tag = 'internal scratch']
  %s0 = inlined_call_operand.vmem [shape: f32[128,32], index: 0, kind: input, shape index: {}]
  %s1 = inlined_call_operand.vmem [shape: f32[32,32], index: 1, kind: input, shape index: {}]
  %s2 = inlined_call_operand.vmem [shape: f32[1,32], index: 2, kind: input, shape index: {}]
  %s3 = inlined_call_operand.vmem [shape: f32[128,32], index: 3, kind: output, shape index: {}]
  %s4 = sld [smem:[#allocation0]]
  $region45: #{tpu_custom_call.1} parent=0
    _
  %s6 = ssub.s32 1, %s4
  %s7 = scalar_select 0, %s6, %s4
  loop: start=0, step=1, limit=4
  $region2: #{tpu_custom_call.1} parent=0 // loop_pre_header
    _
  $region3: #{tpu_custom_call.1} parent=0 // loop_header
    %s9 = sphi 0, %s13
    %p10 = scmp.ge.s32.totalorder %s9, 4
    %s19 = sphi 0, %s21
    %s22 = sphi 0, %s19
    %s23 = sphi 0, %s22
    %s39 = sphi 0, %s23
    %s43 = sphi 0, %s43
    %s45 = sphi 0, %s43
    %s46 = sphi 0, %s45
    %s60 = sphi 0, %s46
    %s64 = sphi 0, %s64
    %s66 = sphi 0, %s64
    %s67 = sphi 0, %s66
    %s81 = sphi 0, %s67
    %s87 = sphi 0, %s89
    %s90 = sphi 0, %s87
    %s91 = sphi 0, %s90
    %s107 = sphi 0, %s91
  $region4: #{tpu_custom_call.1} parent=0 // loop_header_branch
    %12 = sbr.rel (%p10) target = $region8
  $region5: #{tpu_custom_call.1} parent=0 // loop_body
    %s14 = ssub.s32 %s9, 1
    %s15 = ssub.s32 %s9, 2
    %s16 = sadd.s32 %s9, 1
    %s17 = ssub.s32 %s9, %s16
    %p18 = scmp.eq.s32.totalorder %s17, 0
    %s20 = sadd.s32 %s19, 1
    %s21 = scalar_select %p18, %s19, %s20
    %p24 = pneg %p18
    %p25 = scmp.eq.s32.totalorder %s9, 1
    %p26 = por %p24, %p25
    %p27 = scmp.ne.s32.totalorder %s19, %s22
    %p28 = scmp.eq.s32.totalorder %s9, 0
    %p29 = por %p27, %p28
    %p30 = scmp.ne.s32.totalorder %s19, %s22
    %p31 = scmp.eq.s32.totalorder %s14, 1
    %p32 = por %p30, %p31
    %p33 = scmp.ne.s32.totalorder %s22, %s23
    %p34 = scmp.eq.s32.totalorder %s14, 0
    %p35 = por %p33, %p34
    %p36 = scmp.ne.s32.totalorder %s22, %s23
    %p37 = scmp.eq.s32.totalorder %s15, 1
    %p38 = por %p36, %p37
    %p40 = scmp.ne.s32.totalorder %s23, %s39
    %p41 = scmp.eq.s32.totalorder %s15, 0
    %p42 = por %p40, %p41
    %s44 = sadd.s32 %s43, 1
    %p47 = scmp.eq.s32.totalorder %s9, 1
    %p48 = scmp.ne.s32.totalorder %s43, %s45
    %p49 = scmp.eq.s32.totalorder %s9, 0
    %p50 = por %p48, %p49
    %p51 = scmp.ne.s32.totalorder %s43, %s45
    %p52 = scmp.eq.s32.totalorder %s14, 1
    %p53 = por %p51, %p52
    %p54 = scmp.ne.s32.totalorder %s45, %s46
    %p55 = scmp.eq.s32.totalorder %s14, 0
    %p56 = por %p54, %p55
    %p57 = scmp.ne.s32.totalorder %s45, %s46
    %p58 = scmp.eq.s32.totalorder %s15, 1
    %p59 = por %p57, %p58
    %p61 = scmp.ne.s32.totalorder %s46, %s60
    %p62 = scmp.eq.s32.totalorder %s15, 0
    %p63 = por %p61, %p62
    %s65 = sadd.s32 %s64, 1
    %p68 = scmp.eq.s32.totalorder %s9, 1
    %p69 = scmp.ne.s32.totalorder %s64, %s66
    %p70 = scmp.eq.s32.totalorder %s9, 0
    %p71 = por %p69, %p70
    %p72 = scmp.ne.s32.totalorder %s64, %s66
    %p73 = scmp.eq.s32.totalorder %s14, 1
    %p74 = por %p72, %p73
    %p75 = scmp.ne.s32.totalorder %s66, %s67
    %p76 = scmp.eq.s32.totalorder %s14, 0
    %p77 = por %p75, %p76
    %p78 = scmp.ne.s32.totalorder %s66, %s67
    %p79 = scmp.eq.s32.totalorder %s15, 1
    %p80 = por %p78, %p79
    %p82 = scmp.ne.s32.totalorder %s67, %s81
    %p83 = scmp.eq.s32.totalorder %s15, 0
    %p84 = por %p82, %p83
    %s85 = ssub.s32 %s9, %s16
    %p86 = scmp.eq.s32.totalorder %s85, 0
    %s88 = sadd.s32 %s87, 1
    %s89 = scalar_select %p86, %s87, %s88
    %p92 = pneg %p86
    %p93 = scmp.eq.s32.totalorder %s9, 1
    %p94 = por %p92, %p93
    %p95 = scmp.ne.s32.totalorder %s87, %s90
    %p96 = scmp.eq.s32.totalorder %s9, 0
    %p97 = por %p95, %p96
    %p98 = scmp.ne.s32.totalorder %s87, %s90
    %p99 = scmp.eq.s32.totalorder %s14, 1
    %p100 = por %p98, %p99
    %p101 = scmp.ne.s32.totalorder %s90, %s91
    %p102 = scmp.eq.s32.totalorder %s14, 0
    %p103 = por %p101, %p102
    %p104 = scmp.ne.s32.totalorder %s90, %s91
    %p105 = scmp.eq.s32.totalorder %s15, 1
    %p106 = por %p104, %p105
    %p108 = scmp.ne.s32.totalorder %s91, %s107
    %p109 = scmp.eq.s32.totalorder %s15, 0
    %p110 = por %p108, %p109
    %p111 = scmp.le.s32.totalorder 1, %s9
    %p112 = scmp.lt.s32.totalorder %s9, 3
    %p113 = pnand %p111, %p112
    %p114 = pneg %p113
    // Predicated region
    $region9: #{tpu_custom_call.1} parent=5 // pred_check
      _
    $region10: #{tpu_custom_call.1} parent=5 // pred_check_branch
      %116 = sbr.rel (%p113) target = $region12
    $region11: #{tpu_custom_call.1} parent=5 // pred_region
      %s117 = ssub.s32 %s9, 1
      // Predicated region
      $region13: #{tpu_custom_call.1} parent=11 // pred_check
        %p118 = pneg %p56
      $region14: #{tpu_custom_call.1} parent=11 // pred_check_branch
        %120 = sbr.rel (%p118) target = $region16
      $region15: #{tpu_custom_call.1} parent=11 // pred_region
        _
      $region16: #{tpu_custom_call.1} parent=11 // pred_fallthru
        _
      // Predicated region
      $region17: #{tpu_custom_call.1} parent=11 // pred_check
        %p121 = pneg %p77
      $region18: #{tpu_custom_call.1} parent=11 // pred_check_branch
        %123 = sbr.rel (%p121) target = $region20
      $region19: #{tpu_custom_call.1} parent=11 // pred_region
        _
      $region20: #{tpu_custom_call.1} parent=11 // pred_fallthru
        _
    $region12: #{tpu_custom_call.1} parent=5 // pred_fallthru
      _
    %p124 = scmp.lt.s32.totalorder %s9, 2
    // Predicated region
    $region21: #{tpu_custom_call.1} parent=5 // pred_check
      %p125 = pneg %p124
    $region22: #{tpu_custom_call.1} parent=5 // pred_check_branch
      %127 = sbr.rel (%p125) target = $region24
    $region23: #{tpu_custom_call.1} parent=5 // pred_region
      // Predicated region
      $region25: #{tpu_custom_call.1} parent=23 // pred_check
        %p128 = pneg %p29
      $region26: #{tpu_custom_call.1} parent=23 // pred_check_branch
        %130 = sbr.rel (%p128) target = $region28
      $region27: #{tpu_custom_call.1} parent=23 // pred_region
        %s131 = smul.u32 8, %s9
        %p132 = scmp.lt.s32.totalorder %s131, 15
        %s133 = scalar_select %p132, %s131, 15
        %s134 = smul.addr %s133, 8
        %s135 = scalar_lea.vmem %s0, %s134
        %s136 = smul.u32 8, %s9
      $region28: #{tpu_custom_call.1} parent=23 // pred_fallthru
        _
    $region24: #{tpu_custom_call.1} parent=5 // pred_fallthru
      _
    %p137 = scmp.le.s32.totalorder 1, %s9
    %p138 = scmp.lt.s32.totalorder %s9, 3
    %p139 = pnand %p137, %p138
    %p140 = pneg %p139
    // Predicated region
    $region29: #{tpu_custom_call.1} parent=5 // pred_check
      _
    $region30: #{tpu_custom_call.1} parent=5 // pred_check_branch
      %142 = sbr.rel (%p139) target = $region32
    $region31: #{tpu_custom_call.1} parent=5 // pred_region
      %s143 = ssub.s32 %s9, 1
      %s144 = smul.u32 8, %s14
      %p145 = scmp.lt.s32.totalorder %s144, 15
      %s146 = scalar_select %p145, %s144, 15
      %s147 = smul.addr %s146, 8
      %s148 = scalar_lea.vmem %s0, %s147
      %p149 = pneg %p35
      %p150 = pneg %p32
      %p151 = pneg %p56
      %p152 = pneg %p53
      %p153 = pneg %p77
      %p154 = pneg %p74
      %p155 = pneg %p103
      %p156 = pneg %p100
      %s157 = smul.u32 8, %s14
      %p158 = scmp.lt.s32.totalorder %s157, 15
      %s159 = scalar_select %p158, %s157, 15
      %s160 = smul.addr %s159, 8
      %s161 = scalar_lea.vmem %s3, %s160
      %s162 = smul.u32 8, %s14
      %p163 = scmp.lt.s32.totalorder %s162, 15
      %s164 = scalar_select %p163, %s162, 15
      %s165 = smul.addr %s164, 8
      %s166 = scalar_lea.vmem %s0, %s165
      %s167 = smul.u32 8, %s14
      %s168 = smul.u32 8, %s14
      %p169 = scmp.lt.s32.totalorder %s168, 15
      %s170 = scalar_select %p169, %s168, 15
      %s171 = smul.addr %s170, 8
      %s172 = scalar_lea.vmem %s3, %s171
      %s173 = smul.u32 8, %s14
      %v174 = vld [vmem:[%s166] sm:$0xff]
      %v175 = vld [vmem:[%s166 + $0x8] sm:$0xff]
      %v176 = vld [vmem:[%s166 + $0x10] sm:$0xff]
      %v177 = vld [vmem:[%s166 + $0x18] sm:$0xff]
      %v178 = vld [vmem:[%s166 + $0x20] sm:$0xff]
      %v179 = vld [vmem:[%s166 + $0x28] sm:$0xff]
      %v180 = vld [vmem:[%s166 + $0x30] sm:$0xff]
      %v181 = vld [vmem:[%s166 + $0x38] sm:$0xff]
      %v182 = vld [vmem:[%s1] sm:$0xff]
      %v183 = vld [vmem:[%s1 + $0x8] sm:$0xff]
      %v184 = vld [vmem:[%s1 + $0x10] sm:$0xff]
      %v185 = vld [vmem:[%s1 + $0x18] sm:$0xff]
      %v186 = vld [vmem:[%s2] sm:$0x1]
      %v188 = vlaneseq
      %v189 = vshrl.u32 %v188, 7
      %v190 = vsub.s32 0, %v189
      %v191 = vrot.slane %v186, %v190
      %vm193 = vcmask 261120
      %v195 = vsel %vm193, %v174, 0
      %v198 = vsel %vm193, %v175, 0
      %v201 = vsel %vm193, %v176, 0
      %v204 = vsel %vm193, %v177, 0
      %v207 = vsel %vm193, %v178, 0
      %v210 = vsel %vm193, %v179, 0
      %v213 = vsel %vm193, %v180, 0
      %v216 = vsel %vm193, %v181, 0
      %218 = vmatprep.subr.mxu0 0.0
      %219 = vmatpush1.msra.mxu0 %v182
      %220 = vmatprep.subr.mxu0 0.0
      %221 = vmatpush1.msra.mxu0 %v183
      %222 = vmatprep.subr.mxu0 0.0
      %223 = vmatpush1.msra.mxu0 %v184
      %224 = vmatprep.subr.mxu0 0.0
      %225 = vmatpush1.msra.mxu0 %v185
      %226 = vmatprep.subr.mxu0 0.0
      %227 = vmatpush1.msra.mxu0 0.0
      %228 = vmatprep.subr.mxu0 0.0
      %229 = vmatpush1.msra.mxu0 0.0
      %230 = vmatprep.subr.mxu0 0.0
      %231 = vmatpush1.msra.mxu0 0.0
      %232 = vmatprep.subr.mxu0 0.0
      %233 = vmatpush1.msra.mxu0 0.0
      %234 = vmatprep.subr.mxu0 0.0
      %235 = vmatpush1.msra.mxu0 0.0
      %236 = vmatprep.subr.mxu0 0.0
      %237 = vmatpush1.msra.mxu0 0.0
      %238 = vmatprep.subr.mxu0 0.0
      %239 = vmatpush1.msra.mxu0 0.0
      %240 = vmatprep.subr.mxu0 0.0
      %241 = vmatpush1.msra.mxu0 0.0
      %242 = vmatprep.subr.mxu0 0.0
      %243 = vmatpush1.msra.mxu0 0.0
      %244 = vmatprep.subr.mxu0 0.0
      %245 = vmatpush1.msra.mxu0 0.0
      %246 = vmatprep.subr.mxu0 0.0
      %247 = vmatpush1.msra.mxu0 0.0
      %248 = vmatprep.subr.mxu0 0.0
      %249 = vmatpush1.msra.mxu0 0.0
      %250 = vmatprep.subr.mxu0 0.0
      %251 = vmatpush1.msra.mxu0 0.0
      %252 = vmatprep.subr.mxu0 0.0
      %253 = vmatpush1.msra.mxu0 0.0
      %254 = vmatprep.subr.mxu0 0.0
      %255 = vmatpush1.msra.mxu0 0.0
      %256 = vmatprep.subr.mxu0 0.0
      %257 = vmatpush1.msra.mxu0 0.0
      %258 = vmatprep.subr.mxu0 0.0
      %259 = vmatpush1.msra.mxu0 0.0
      %260 = vmatprep.subr.mxu0 0.0
      %261 = vmatpush1.msra.mxu0 0.0
      %262 = vmatprep.subr.mxu0 0.0
      %263 = vmatpush1.msra.mxu0 0.0
      %264 = vmatprep.subr.mxu0 0.0
      %265 = vmatpush1.msra.mxu0 0.0
      %266 = vmatprep.subr.mxu0 0.0
      %267 = vmatpush1.msra.mxu0 0.0
      %268 = vmatprep.subr.mxu0 0.0
      %269 = vmatpush1.msra.mxu0 0.0
      %270 = vmatprep.subr.mxu0 0.0
      %271 = vmatpush1.msra.mxu0 0.0
      %272 = vmatprep.subr.mxu0 0.0
      %273 = vmatpush1.msra.mxu0 0.0
      %274 = vmatprep.subr.mxu0 0.0
      %275 = vmatpush1.msra.mxu0 0.0
      %276 = vmatprep.subr.mxu0 0.0
      %277 = vmatpush1.msra.mxu0 0.0
      %278 = vmatprep.subr.mxu0 0.0
      %279 = vmatpush1.msra.mxu0 0.0
      %280 = vmatprep.subr.mxu0 0.0
      %281 = vmatpush1.msra.mxu0 0.0
      %282 = vmatprep.mubr.f32.mxu0 0.0
      %283 = vmatmul.mubr.f32.gmra.mrb[0].mxu0 %v195
      %v284 = vpop.f32.mrb[0].mxu0
      %v285 = vadd.f32 %v191, %v284
      %v286 = vpop.f32.mrb[0].mxu0
      %287 = vmatprep.mubr.f32.mxu0 0.0
      %288 = vmatmul.mubr.f32.gmra.mrb[0].mxu0 %v198
      %v289 = vpop.f32.mrb[0].mxu0
      %v290 = vadd.f32 %v191, %v289
      %v291 = vpop.f32.mrb[0].mxu0
      %292 = vmatprep.mubr.f32.mxu0 0.0
      %293 = vmatmul.mubr.f32.gmra.mrb[0].mxu0 %v201
      %v294 = vpop.f32.mrb[0].mxu0
      %v295 = vadd.f32 %v191, %v294
      %v296 = vpop.f32.mrb[0].mxu0
      %297 = vmatprep.mubr.f32.mxu0 0.0
      %298 = vmatmul.mubr.f32.gmra.mrb[0].mxu0 %v204
      %v299 = vpop.f32.mrb[0].mxu0
      %v300 = vadd.f32 %v191, %v299
      %v301 = vpop.f32.mrb[0].mxu0
      %302 = vmatprep.mubr.f32.mxu0 0.0
      %303 = vmatmul.mubr.f32.gmra.mrb[0].mxu0 %v207
      %v304 = vpop.f32.mrb[0].mxu0
      %v305 = vadd.f32 %v191, %v304
      %v306 = vpop.f32.mrb[0].mxu0
      %307 = vmatprep.mubr.f32.mxu0 0.0
      %308 = vmatmul.mubr.f32.gmra.mrb[0].mxu0 %v210
      %v309 = vpop.f32.mrb[0].mxu0
      %v310 = vadd.f32 %v191, %v309
      %v311 = vpop.f32.mrb[0].mxu0
      %312 = vmatprep.mubr.f32.mxu0 0.0
      %313 = vmatmul.mubr.f32.gmra.mrb[0].mxu0 %v213
      %v314 = vpop.f32.mrb[0].mxu0
      %v315 = vadd.f32 %v191, %v314
      %v316 = vpop.f32.mrb[0].mxu0
      %317 = vmatprep.mubr.f32.mxu0 0.0
      %318 = vmatmul.mubr.f32.gmra.mrb[0].mxu0 %v216
      %v319 = vpop.f32.mrb[0].mxu0
      %v320 = vadd.f32 %v191, %v319
      %v321 = vpop.f32.mrb[0].mxu0
      %322 = vdwg.mxu0
      %323 = vst.msk [vmem:[%s172] sm:$0xff] %vm193, %v285
      %324 = vst.msk [vmem:[%s172 + $0x8] sm:$0xff] %vm193, %v290
      %325 = vst.msk [vmem:[%s172 + $0x10] sm:$0xff] %vm193, %v295
      %326 = vst.msk [vmem:[%s172 + $0x18] sm:$0xff] %vm193, %v300
      %327 = vst.msk [vmem:[%s172 + $0x20] sm:$0xff] %vm193, %v305
      %328 = vst.msk [vmem:[%s172 + $0x28] sm:$0xff] %vm193, %v310
      %329 = vst.msk [vmem:[%s172 + $0x30] sm:$0xff] %vm193, %v315
      %330 = vst.msk [vmem:[%s172 + $0x38] sm:$0xff] %vm193, %v320
      %s331 = smul.u32 8, %s14
      %p332 = scmp.lt.s32.totalorder %s331, 15
      %s333 = scalar_select %p332, %s331, 15
      %s334 = smul.addr %s333, 8
      %s335 = scalar_lea.vmem %s3, %s334
      // Predicated region
      $region33: #{tpu_custom_call.1} parent=31 // pred_check
        %p336 = pneg %p100
      $region34: #{tpu_custom_call.1} parent=31 // pred_check_branch
        %338 = sbr.rel (%p336) target = $region36
      $region35: #{tpu_custom_call.1} parent=31 // pred_region
        %s339 = smul.u32 8, %s14
      $region36: #{tpu_custom_call.1} parent=31 // pred_fallthru
        _
    $region32: #{tpu_custom_call.1} parent=5 // pred_fallthru
      _
    %p340 = scmp.le.s32.totalorder 2, %s9
    // Predicated region
    $region37: #{tpu_custom_call.1} parent=5 // pred_check
      %p341 = pneg %p340
    $region38: #{tpu_custom_call.1} parent=5 // pred_check_branch
      %343 = sbr.rel (%p341) target = $region40
    $region39: #{tpu_custom_call.1} parent=5 // pred_region
      %s344 = ssub.s32 %s9, 2
      // Predicated region
      $region41: #{tpu_custom_call.1} parent=39 // pred_check
        %p345 = pneg %p106
      $region42: #{tpu_custom_call.1} parent=39 // pred_check_branch
        %347 = sbr.rel (%p345) target = $region44
      $region43: #{tpu_custom_call.1} parent=39 // pred_region
        %s348 = smul.u32 8, %s15
        %p349 = scmp.lt.s32.totalorder %s348, 15
        %s350 = scalar_select %p349, %s348, 15
        %s351 = smul.addr %s350, 8
        %s352 = scalar_lea.vmem %s3, %s351
      $region44: #{tpu_custom_call.1} parent=39 // pred_fallthru
        _
    $region40: #{tpu_custom_call.1} parent=5 // pred_fallthru
      _
  $region6: #{tpu_custom_call.1} parent=0 // loop_footer
    %s13 = sadd.s32 1, %s9
  $region7: #{tpu_custom_call.1} parent=0 // loop_footer_branch
    %8 = sbr.rel target = $region3
  $region8: #{tpu_custom_call.1} parent=0 // loop_exit
    _

</llo_original>
